<compile_context>
chip_gen: v7x
topology: tpu7x:2x2x1
jax: 0.10.0
libtpu: 0.0.40
codegen_flags: <defaults>
</compile_context>

<pallas_src>
import functools

import numpy as np

import jax
import jax.numpy as jnp
from jax import lax
from jax.experimental import pallas as pl
from jax.experimental.pallas import tpu as pltpu

EPS = 1e-5


# --------------------------------------------------------------------------- #
# host-side helpers (run once per call, plain XLA)
# --------------------------------------------------------------------------- #
def _band_weights(w_hwio, w_in, wo, stride, pad, dtype):
    """HWIO (k,k,c,cout) -> (k, w_in*c, wo*cout) banded ("Toeplitz") weights.

    Band kh, row q*c+ci, lane j*cout+co holds w[kh, kw, ci, co] with
    kw = q - j*stride + pad.  Unpadded input columns q outside [0, w_in) are
    simply never referenced, so the conv's width zero-padding is absorbed into
    the weight and the kernel needs no column halo.  With these weights the
    whole kxk conv is k lane-dense matmuls (Ho, w_in*c) @ (w_in*c, wo*cout).
    """
    k = w_hwio.shape[0]
    c, cout = w_hwio.shape[2], w_hwio.shape[3]
    wf = w_hwio.astype(jnp.float32)
    band = jnp.zeros((k, w_in * c, wo, cout), jnp.float32)
    for j in range(wo):
        for kw in range(k):
            q = j * stride + kw - pad
            if 0 <= q < w_in:
                band = band.at[:, q * c:(q + 1) * c, j, :].set(wf[:, kw])
    return band.reshape(k, w_in * c, wo * cout).astype(dtype)


def _proj_band(ws, w_in, wo, stride, dtype):
    """1x1-conv weight (cin,cout) -> (w_in*cin, wo*cout) block-banded matrix."""
    cin, cout = ws.shape
    wf = ws.astype(jnp.float32)
    band = jnp.zeros((w_in * cin, wo, cout), jnp.float32)
    for j in range(wo):
        q = j * stride
        band = band.at[q * cin:(q + 1) * cin, j, :].set(wf)
    return band.reshape(w_in * cin, wo * cout).astype(dtype)


def _bn_scale_shift(stats, gamma, beta, count, wo, cout):
    """Training-mode BN (biased batch variance) folded into a per-channel affine."""
    s = stats.reshape(stats.shape[0], 2, wo, cout).sum(axis=(0, 2))  # (2, cout)
    mean = s[0] / count
    var = s[1] / count - mean * mean
    scale = gamma * lax.rsqrt(var + EPS)
    return scale, beta - mean * scale


def _tile_lane(v, wo):
    """Per-channel (C,) vector -> lane-dense (1, wo*C) broadcastable row."""
    return jnp.tile(v, wo)[None, :].astype(jnp.float32)


def _round_up(v, m):
    return ((v + m - 1) // m) * m


def _vmem_bytes(shape, dtype):
    """Rough VMEM footprint of one block, including (8,128) tile padding."""
    itemsize = np.dtype(dtype).itemsize
    shape = tuple(int(d) for d in shape)
    if len(shape) == 1:
        return 8 * _round_up(shape[0], 128) * itemsize
    lead = 1
    for d in shape[:-2]:
        lead *= d
    return lead * _round_up(shape[-2], 8) * _round_up(shape[-1], 128) * itemsize


def _compiler_params(block_shapes, scratch_shapes):
    blocks = sum(_vmem_bytes(s, d) for s, d in block_shapes)
    scratch = sum(_vmem_bytes(s, d) for s, d in scratch_shapes)
    footprint = 2 * blocks + scratch                     # double-buffered pipeline
    try:
        cap = int(pltpu.get_tpu_info().vmem_capacity_bytes)
    except Exception:
        cap = 64 * 1024 * 1024                           # v7x per-core VMEM
    limit = int(min(cap - (8 << 20), max(32 << 20, 2 * footprint + (4 << 20))))
    return pltpu.CompilerParams(dimension_semantics=("parallel",),
                                vmem_limit_bytes=limit)


def _pick_row_block(rows, target=512):
    """Largest row block <= target dividing `rows`, multiple of 8, leaving >=2
    grid steps when possible (v7x runs 2 TensorCores on a parallel axis)."""
    limit = min(target, rows)
    if rows >= 16:
        limit = min(limit, rows // 2)
    for rb in range(limit, 7, -1):
        if rows % rb == 0 and rb % 8 == 0:
            return rb
    return rows


# --------------------------------------------------------------------------- #
# in-kernel helpers
# --------------------------------------------------------------------------- #
def _zero_row_halo(ref, pad, h):
    """Zero only the top/bottom pad-row strips of a fused (H+2p, W*C) scratch."""
    hp, wc = ref.shape
    ref[0:pad, :] = jnp.zeros((pad, wc), ref.dtype)
    ref[pad + h:hp, :] = jnp.zeros((hp - pad - h, wc), ref.dtype)


# --------------------------------------------------------------------------- #
# kernels (grid = (N,): one batch sample per grid step, "parallel" semantics)
# --------------------------------------------------------------------------- #
def conv1_kernel(x_ref, w1_ref, *rest, k, stride, pad, h, ho, has_proj):
    """conv1 (kxk, stride) + optional 1x1 projection, plus BN partial sums."""
    if has_proj:
        ws_ref, a1_ref, st1_ref, as_ref, sts_ref, xp_ref = rest
    else:
        a1_ref, st1_ref, xp_ref = rest

    cdt = xp_ref.dtype
    x = x_ref[0]                                    # (H, W*Cin) f32, lane-fused

    # row-halo scratch: only the pad rows are zeroed (re-zeroed every step so the
    # result does not depend on which core runs which step), interior written once
    if pad > 0:
        _zero_row_halo(xp_ref, pad, h)
    xp_ref[pad:pad + h, :] = x.astype(cdt)

    # conv1 as k lane-dense band matmuls, f32 accumulation
    acc = jnp.zeros(a1_ref.shape[1:], jnp.float32)
    for kh in range(k):
        if stride == 1:
            band = xp_ref[kh:kh + ho, :]
        else:
            # TODO(synk): fold the row stride into the input DMA / index_map.
            band = xp_ref[...][kh:kh + stride * (ho - 1) + 1:stride, :]
        acc = acc + jnp.dot(band, w1_ref[kh], preferred_element_type=jnp.float32)

    st1_ref[0, 0:1, :] = jnp.sum(acc, axis=0, keepdims=True)       # BN1 sums (f32)
    st1_ref[0, 1:2, :] = jnp.sum(acc * acc, axis=0, keepdims=True)
    a1_ref[0] = acc.astype(a1_ref.dtype)            # lane-dense (Ho, Wo*Cout) store

    if has_proj:
        xr = x if stride == 1 else x[::stride, :]
        proj = jnp.dot(xr.astype(ws_ref.dtype), ws_ref[...],
                       preferred_element_type=jnp.float32)
        sts_ref[0, 0:1, :] = jnp.sum(proj, axis=0, keepdims=True)
        sts_ref[0, 1:2, :] = jnp.sum(proj * proj, axis=0, keepdims=True)
        as_ref[0] = proj.astype(as_ref.dtype)


def conv2_kernel(a1_ref, w2_ref, sc1_ref, sh1_ref, a2_ref, st2_ref, hp_ref,
                 *, k, pad, ho):
    """Folded BN1 affine + ReLU (f32, lane-dense) on a1, then conv2 (kxk, s=1)."""
    cdt = hp_ref.dtype
    hval = jnp.maximum(
        a1_ref[0].astype(jnp.float32) * sc1_ref[...] + sh1_ref[...], 0.0)

    if pad > 0:
        _zero_row_halo(hp_ref, pad, ho)
    hp_ref[pad:pad + ho, :] = hval.astype(cdt)

    acc = jnp.zeros(a2_ref.shape[1:], jnp.float32)
    for kh in range(k):
        acc = acc + jnp.dot(hp_ref[kh:kh + ho, :], w2_ref[kh],
                            preferred_element_type=jnp.float32)

    st2_ref[0, 0:1, :] = jnp.sum(acc, axis=0, keepdims=True)
    st2_ref[0, 1:2, :] = jnp.sum(acc * acc, axis=0, keepdims=True)
    a2_ref[0] = acc.astype(a2_ref.dtype)


def bn_add_relu_kernel(a2_ref, sh_ref, sc2_ref, b2_ref, scs_ref, bs_ref, o_ref):
    """Lane-dense, row-blocked finalize: BN affines + residual add + ReLU."""
    left = a2_ref[...].astype(jnp.float32) * sc2_ref[...] + b2_ref[...]
    short = sh_ref[...].astype(jnp.float32) * scs_ref[...] + bs_ref[...]
    o_ref[...] = jnp.maximum(left + short, 0.0).astype(o_ref.dtype)


# --------------------------------------------------------------------------- #
# wrapper
# --------------------------------------------------------------------------- #
def residual_block(x_nchw, params, *, stride=1, kernel_size=3,
                   mxu_dtype=jnp.bfloat16):
    """Pallas ResidualBlock forward. x_nchw: (N, Cin, H, W) float32."""
    k = kernel_size
    pad = (k - 1) // 2
    f32 = jnp.float32

    # TODO(synk): NCHW<->NHWC transposes kept so the public interface matches
    # torch.nn.Conv2d; drop them if the caller can provide NHWC directly.
    x = jnp.transpose(x_nchw, (0, 2, 3, 1)).astype(f32)
    n, h, w, cin = x.shape
    cout = params["w1"].shape[-1]
    ho = (h + 2 * pad - k) // stride + 1
    wo = (w + 2 * pad - k) // stride + 1
    m = n * ho * wo
    has_proj = (stride != 1) or (cin != cout)
    inter = mxu_dtype                       # inter-pass activation storage dtype
    lane = wo * cout

    x_f = x.reshape(n, h, w * cin)          # lane-fused input (free reshape)

    # banded conv weights (im2col done once, on the weight side, on the host)
    w1b = _band_weights(params["w1"], w, wo, stride, pad, mxu_dtype)
    w2b = _band_weights(params["w2"], wo, wo, 1, pad, mxu_dtype)
    wsb = _proj_band(params["ws"], w, wo, stride, mxu_dtype) if has_proj else None

    # ---- BlockSpecs (everything lane-dense) ----------------------------------
    x_spec = pl.BlockSpec((1, h, w * cin), lambda i: (i, 0, 0))
    w1_spec = pl.BlockSpec(w1b.shape, lambda i: (0, 0, 0))
    w2_spec = pl.BlockSpec(w2b.shape, lambda i: (0, 0, 0))
    act_spec = pl.BlockSpec((1, ho, lane), lambda i: (i, 0, 0))
    stat_spec = pl.BlockSpec((1, 2, lane), lambda i: (i, 0, 0))
    vec_spec = pl.BlockSpec((1, lane), lambda i: (0, 0))

    # ---- pass 1: conv1 (+ 1x1 projection) and BN partial sums ----------------
    kern1 = functools.partial(conv1_kernel, k=k, stride=stride, pad=pad,
                              h=h, ho=ho, has_proj=has_proj)
    if has_proj:
        ws_spec = pl.BlockSpec(wsb.shape, lambda i: (0, 0))
        in_specs1 = [x_spec, w1_spec, ws_spec]
        args1 = (x_f, w1b, wsb)
        out_shape1 = (jax.ShapeDtypeStruct((n, ho, lane), inter),
                      jax.ShapeDtypeStruct((n, 2, lane), f32),
                      jax.ShapeDtypeStruct((n, ho, lane), inter),
                      jax.ShapeDtypeStruct((n, 2, lane), f32))
        out_specs1 = (act_spec, stat_spec, act_spec, stat_spec)
    else:
        in_specs1 = [x_spec, w1_spec]
        args1 = (x_f, w1b)
        out_shape1 = (jax.ShapeDtypeStruct((n, ho, lane), inter),
                      jax.ShapeDtypeStruct((n, 2, lane), f32))
        out_specs1 = (act_spec, stat_spec)

    blocks1 = ([((1, h, w * cin), f32), (w1b.shape, mxu_dtype),
                ((1, ho, lane), inter), ((1, 2, lane), f32)]
               + ([(wsb.shape, mxu_dtype), ((1, ho, lane), inter),
                   ((1, 2, lane), f32)] if has_proj else []))
    cp1 = _compiler_params(blocks1, [((h + 2 * pad, w * cin), mxu_dtype)])
    ce1 = pl.CostEstimate(
        flops=2 * n * ho * (w * cin) * lane * (k + (1 if has_proj else 0)),
        transcendentals=0,
        bytes_accessed=int(x_f.size * 4 + w1b.size * np.dtype(mxu_dtype).itemsize
                           + (2 if has_proj else 1)
                           * n * ho * lane * np.dtype(inter).itemsize
                           + (2 if has_proj else 1) * n * 2 * lane * 4))

    res1 = pl.pallas_call(
        kern1, out_shape=out_shape1,
        grid_spec=pltpu.PrefetchScalarGridSpec(
            num_scalar_prefetch=0, grid=(n,),
            in_specs=in_specs1, out_specs=out_specs1,
            scratch_shapes=[pltpu.VMEM((h + 2 * pad, w * cin), mxu_dtype)]),
        compiler_params=cp1, cost_estimate=ce1,
    )(*args1)

    if has_proj:
        a1, st1, a_s, sts = res1
    else:
        a1, st1 = res1

    sc1, sh1 = _bn_scale_shift(st1, params["g1"], params["b1"], m, wo, cout)

    # ---- pass 2: folded BN1 + ReLU + conv2 and BN2 partial sums --------------
    kern2 = functools.partial(conv2_kernel, k=k, pad=pad, ho=ho)
    cp2 = _compiler_params(
        [((1, ho, lane), inter), (w2b.shape, mxu_dtype), ((1, lane), f32),
         ((1, lane), f32), ((1, ho, lane), inter), ((1, 2, lane), f32)],
        [((ho + 2 * pad, lane), mxu_dtype)])
    ce2 = pl.CostEstimate(
        flops=2 * n * ho * lane * lane * k + 4 * n * ho * lane,
        transcendentals=0,
        bytes_accessed=int(2 * n * ho * lane * np.dtype(inter).itemsize
                           + w2b.size * np.dtype(mxu_dtype).itemsize
                           + n * 2 * lane * 4))

    a2, st2 = pl.pallas_call(
        kern2,
        out_shape=(jax.ShapeDtypeStruct((n, ho, lane), inter),
                   jax.ShapeDtypeStruct((n, 2, lane), f32)),
        grid_spec=pltpu.PrefetchScalarGridSpec(
            num_scalar_prefetch=0, grid=(n,),
            in_specs=[act_spec, w2_spec, vec_spec, vec_spec],
            out_specs=(act_spec, stat_spec),
            scratch_shapes=[pltpu.VMEM((ho + 2 * pad, lane), mxu_dtype)]),
        compiler_params=cp2, cost_estimate=ce2,
    )(a1, w2b, _tile_lane(sc1, wo), _tile_lane(sh1, wo))

    sc2, sh2 = _bn_scale_shift(st2, params["g2"], params["b2"], m, wo, cout)
    if has_proj:
        scs, shs = _bn_scale_shift(sts, params["gs"], params["bs"], m, wo, cout)
        short = a_s
    else:
        scs = jnp.ones((cout,), f32)
        shs = jnp.zeros((cout,), f32)
        short = x_f                       # identity shortcut: cin==cout, stride==1

    # ---- pass 3: BN affines + residual add + ReLU (lane-dense, row-blocked) --
    rows = n * ho
    rb = _pick_row_block(rows)
    a2_d = a2.reshape(rows, lane)
    short_d = short.reshape(rows, lane)
    row_spec = pl.BlockSpec((rb, lane), lambda r: (r, 0))
    cp3 = _compiler_params(
        [((rb, lane), inter), ((rb, lane), short_d.dtype), ((rb, lane), f32)]
        + [((1, lane), f32)] * 4, [])
    ce3 = pl.CostEstimate(
        flops=6 * rows * lane, transcendentals=0,
        bytes_accessed=int(rows * lane * (np.dtype(inter).itemsize
                                          + np.dtype(short_d.dtype).itemsize + 4)
                           + 4 * lane * 4))

    out = pl.pallas_call(
        bn_add_relu_kernel,
        out_shape=jax.ShapeDtypeStruct((rows, lane), f32),
        grid_spec=pltpu.PrefetchScalarGridSpec(
            num_scalar_prefetch=0, grid=(rows // rb,),
            in_specs=[row_spec, row_spec, vec_spec, vec_spec, vec_spec, vec_spec],
            out_specs=row_spec),
        compiler_params=cp3, cost_estimate=ce3,
    )(a2_d, short_d, _tile_lane(sc2, wo), _tile_lane(sh2, wo),
      _tile_lane(scs, wo), _tile_lane(shs, wo))

    out = out.reshape(n, ho, wo, cout)
    return jnp.transpose(out, (0, 3, 1, 2))            # NHWC -> NCHW


# --------------------------------------------------------------------------- #
# pure-JAX reference (f32, matches PyTorch training-mode forward)
# --------------------------------------------------------------------------- #
def _ref_conv(x_nhwc, w_hwio, stride):
    kh, kw = w_hwio.shape[0], w_hwio.shape[1]
    return lax.conv_general_dilated(
        x_nhwc, w_hwio, window_strides=(stride, stride),
        padding=[((kh - 1) // 2,) * 2, ((kw - 1) // 2,) * 2],
        dimension_numbers=("NHWC", "HWIO", "NHWC"),
        precision=lax.Precision.HIGHEST)


def _ref_bn(x_nhwc, gamma, beta):
    mean = jnp.mean(x_nhwc, axis=(0, 1, 2), keepdims=True)
    var = jnp.mean((x_nhwc - mean) ** 2, axis=(0, 1, 2), keepdims=True)
    return (x_nhwc - mean) * lax.rsqrt(var + EPS) * gamma + beta


def residual_block_reference(x_nchw, params, *, stride=1, kernel_size=3):
    x = jnp.transpose(x_nchw, (0, 2, 3, 1))
    cin = x.shape[-1]
    cout = params["w1"].shape[-1]
    h = jnp.maximum(_ref_bn(_ref_conv(x, params["w1"], stride),
                            params["g1"], params["b1"]), 0.0)
    left = _ref_bn(_ref_conv(h, params["w2"], 1), params["g2"], params["b2"])
    if stride != 1 or cin != cout:
        sc = _ref_bn(_ref_conv(x, params["ws"][None, None], stride),
                     params["gs"], params["bs"])
    else:
        sc = x
    out = jnp.maximum(left + sc, 0.0)
    return jnp.transpose(out, (0, 3, 1, 2))


# --------------------------------------------------------------------------- #
# main
# --------------------------------------------------------------------------- #
if __name__ == "__main__":
    # module config: ResidualBlock(inchannel=4, outchannel=8, stride=1, kernel_size=3)
    N, Cin, H, W = 2, 4, 16, 16
    Cout, stride, k = 8, 1, 3

    key = jax.random.PRNGKey(0)
    keys = jax.random.split(key, 8)

    def he(key, shape, fan_in):
        return jax.random.normal(key, shape, jnp.float32) * (2.0 / fan_in) ** 0.5

    params = {
        # conv weights stored HWIO (torch OIHW -> HWIO transpose equivalent)
        "w1": he(keys[0], (k, k, Cin, Cout), k * k * Cin),
        "w2": he(keys[1], (k, k, Cout, Cout), k * k * Cout),
        "ws": he(keys[2], (Cin, Cout), Cin),                     # 1x1 projection
        # BN affine params, shape (Cout,)
        "g1": 1.0 + 0.1 * jax.random.normal(keys[3], (Cout,), jnp.float32),
        "b1": 0.1 * jax.random.normal(keys[4], (Cout,), jnp.float32),
        "g2": 1.0 + 0.1 * jax.random.normal(keys[5], (Cout,), jnp.float32),
        "b2": 0.1 * jax.random.normal(keys[6], (Cout,), jnp.float32),
        "gs": jnp.ones((Cout,), jnp.float32),
        "bs": jnp.zeros((Cout,), jnp.float32),
    }

    x = jax.random.normal(keys[7], (N, Cin, H, W), jnp.float32)

    ref = jax.block_until_ready(
        residual_block_reference(x, params, stride=stride, kernel_size=k))

    # 1) f32 MXU operands / f32 intermediates: tight structural / BN check.
    fwd_f32 = jax.jit(functools.partial(residual_block, stride=stride,
                                        kernel_size=k, mxu_dtype=jnp.float32))
    out_f32 = jax.block_until_ready(fwd_f32(x, params))
    assert out_f32.shape == (N, Cout, H // stride, W // stride), out_f32.shape
    assert jnp.allclose(out_f32, ref, atol=1e-3, rtol=1e-3), \
        float(jnp.max(jnp.abs(out_f32 - ref)))

    # 2) bf16 fast path: bf16 MXU operands, bf16 staging scratch, bf16 inter-pass
    #    activations (f32 accumulation / BN math) -> a few e-2 deviation vs. the
    #    f32 reference is expected from input/weight/activation quantization.
    fwd_bf16 = jax.jit(functools.partial(residual_block, stride=stride,
                                         kernel_size=k, mxu_dtype=jnp.bfloat16))
    out_bf16 = jax.block_until_ready(fwd_bf16(x, params))
    assert out_bf16.shape == (N, Cout, H // stride, W // stride), out_bf16.shape
    assert jnp.allclose(out_bf16, ref, atol=1e-1, rtol=5e-2), \
        float(jnp.max(jnp.abs(out_bf16 - ref)))

    print("KERNEL_OK")
</pallas_src>

<mosaic_0001>
module attributes {stable_mosaic.version = 11 : i64} {
  func.func @conv1_kernel(%arg0: i32, %arg1: memref<1x16x64xf32, #tpu.memory_space<vmem>>, %arg2: memref<3x64x128xf32, #tpu.memory_space<vmem>>, %arg3: memref<64x128xf32, #tpu.memory_space<vmem>>, %arg4: memref<1x16x128xf32, #tpu.memory_space<vmem>>, %arg5: memref<1x2x128xf32, #tpu.memory_space<vmem>>, %arg6: memref<1x16x128xf32, #tpu.memory_space<vmem>>, %arg7: memref<1x2x128xf32, #tpu.memory_space<vmem>>, %arg8: memref<18x64xf32, #tpu.memory_space<vmem>>) attributes {dimension_semantics = [#tpu.dimension_semantics<parallel>], iteration_bounds = array<i64: 2>, scalar_prefetch = 0 : i64, scratch_operands = 1 : i64, tpu.core_type = #tpu.core_type<tc>, window_params = [{transform_indices = @transform_0, window_bounds = array<i64: 1, 16, 64>}, {pipeline_mode = #tpu.pipeline_mode<synchronous>, transform_indices = @transform_1, window_bounds = array<i64: 3, 64, 128>}, {pipeline_mode = #tpu.pipeline_mode<synchronous>, transform_indices = @transform_2, window_bounds = array<i64: 64, 128>}, {transform_indices = @transform_3, window_bounds = array<i64: 1, 16, 128>}, {transform_indices = @transform_4, window_bounds = array<i64: 1, 2, 128>}, {transform_indices = @transform_5, window_bounds = array<i64: 1, 16, 128>}, {transform_indices = @transform_6, window_bounds = array<i64: 1, 2, 128>}]} {
    %c0 = arith.constant 0 : index
    %c0_0 = arith.constant 0 : index
    %c0_1 = arith.constant 0 : index
    %0 = vector.load %arg1[%c0, %c0_0, %c0_1] : memref<1x16x64xf32, #tpu.memory_space<vmem>>, vector<1x16x64xf32>
    %1 = vector.shape_cast %0 : vector<1x16x64xf32> to vector<16x64xf32>
    %cst = arith.constant 0.000000e+00 : f32
    %2 = vector.broadcast %cst : f32 to vector<1x64xf32>
    %c0_2 = arith.constant 0 : index
    %c0_3 = arith.constant 0 : index
    %3 = vector.load %arg8[%c0_2, %c0_3] : memref<18x64xf32, #tpu.memory_space<vmem>>, vector<1x64xf32>
    tpu.vector_store %arg8[%c0_2, %c0_3], %2 {strides = array<i32>} : memref<18x64xf32, #tpu.memory_space<vmem>>, vector<1x64xf32>,
    %cst_4 = arith.constant 0.000000e+00 : f32
    %4 = vector.broadcast %cst_4 : f32 to vector<1x64xf32>
    %c17 = arith.constant 17 : index
    %c0_5 = arith.constant 0 : index
    %5 = vector.load %arg8[%c17, %c0_5] : memref<18x64xf32, #tpu.memory_space<vmem>>, vector<1x64xf32>
    tpu.vector_store %arg8[%c17, %c0_5], %4 {strides = array<i32>} : memref<18x64xf32, #tpu.memory_space<vmem>>, vector<1x64xf32>,
    %c1 = arith.constant 1 : index
    %c0_6 = arith.constant 0 : index
    %6 = vector.load %arg8[%c1, %c0_6] : memref<18x64xf32, #tpu.memory_space<vmem>>, vector<16x64xf32>
    tpu.vector_store %arg8[%c1, %c0_6], %1 {strides = array<i32>} : memref<18x64xf32, #tpu.memory_space<vmem>>, vector<16x64xf32>,
    %cst_7 = arith.constant 0.000000e+00 : f32
    %7 = vector.broadcast %cst_7 : f32 to vector<16x128xf32>
    %c0_8 = arith.constant 0 : index
    %c0_9 = arith.constant 0 : index
    %8 = vector.load %arg8[%c0_8, %c0_9] : memref<18x64xf32, #tpu.memory_space<vmem>>, vector<16x64xf32>
    %c0_10 = arith.constant 0 : index
    %c0_11 = arith.constant 0 : index
    %c0_12 = arith.constant 0 : index
    %9 = vector.load %arg2[%c0_10, %c0_11, %c0_12] : memref<3x64x128xf32, #tpu.memory_space<vmem>>, vector<1x64x128xf32>
    %10 = vector.shape_cast %9 : vector<1x64x128xf32> to vector<64x128xf32>
    %cst_13 = arith.constant dense<0.000000e+00> : vector<16x128xf32>
    %11 = tpu.matmul %8, %10, %cst_13 {dimension_numbers = #tpu.dot_dimension_numbers<[1], [0], [0], [1], [0, 0, 1, 1], [], []>} : vector<16x64xf32>, vector<64x128xf32>, vector<16x128xf32> -> vector<16x128xf32>
    %12 = arith.addf %7, %11 : vector<16x128xf32>
    %c1_14 = arith.constant 1 : index
    %c0_15 = arith.constant 0 : index
    %13 = vector.load %arg8[%c1_14, %c0_15] : memref<18x64xf32, #tpu.memory_space<vmem>>, vector<16x64xf32>
    %c1_16 = arith.constant 1 : index
    %c0_17 = arith.constant 0 : index
    %c0_18 = arith.constant 0 : index
    %14 = vector.load %arg2[%c1_16, %c0_17, %c0_18] : memref<3x64x128xf32, #tpu.memory_space<vmem>>, vector<1x64x128xf32>
    %15 = vector.shape_cast %14 : vector<1x64x128xf32> to vector<64x128xf32>
    %cst_19 = arith.constant dense<0.000000e+00> : vector<16x128xf32>
    %16 = tpu.matmul %13, %15, %cst_19 {dimension_numbers = #tpu.dot_dimension_numbers<[1], [0], [0], [1], [0, 0, 1, 1], [], []>} : vector<16x64xf32>, vector<64x128xf32>, vector<16x128xf32> -> vector<16x128xf32>
    %17 = arith.addf %12, %16 : vector<16x128xf32>
    %c2 = arith.constant 2 : index
    %c0_20 = arith.constant 0 : index
    %18 = vector.load %arg8[%c2, %c0_20] : memref<18x64xf32, #tpu.memory_space<vmem>>, vector<16x64xf32>
    %c2_21 = arith.constant 2 : index
    %c0_22 = arith.constant 0 : index
    %c0_23 = arith.constant 0 : index
    %19 = vector.load %arg2[%c2_21, %c0_22, %c0_23] : memref<3x64x128xf32, #tpu.memory_space<vmem>>, vector<1x64x128xf32>
    %20 = vector.shape_cast %19 : vector<1x64x128xf32> to vector<64x128xf32>
    %cst_24 = arith.constant dense<0.000000e+00> : vector<16x128xf32>
    %21 = tpu.matmul %18, %20, %cst_24 {dimension_numbers = #tpu.dot_dimension_numbers<[1], [0], [0], [1], [0, 0, 1, 1], [], []>} : vector<16x64xf32>, vector<64x128xf32>, vector<16x128xf32> -> vector<16x128xf32>
    %22 = arith.addf %17, %21 : vector<16x128xf32>
    %cst_25 = arith.constant dense<0.000000e+00> : vector<128xf32>
    %23 = vector.multi_reduction <add>, %22, %cst_25 [0] : vector<16x128xf32> to vector<128xf32>
    %24 = vector.shape_cast %23 : vector<128xf32> to vector<1x128xf32>
    %c0_26 = arith.constant 0 : index
    %c0_27 = arith.constant 0 : index
    %c0_28 = arith.constant 0 : index
    %25 = vector.load %arg5[%c0_26, %c0_27, %c0_28] : memref<1x2x128xf32, #tpu.memory_space<vmem>>, vector<1x1x128xf32>
    %26 = vector.shape_cast %25 : vector<1x1x128xf32> to vector<1x128xf32>
    %27 = vector.shape_cast %24 : vector<1x128xf32> to vector<1x1x128xf32>
    tpu.vector_store %arg5[%c0_26, %c0_27, %c0_28], %27 {strides = array<i32>} : memref<1x2x128xf32, #tpu.memory_space<vmem>>, vector<1x1x128xf32>,
    %28 = arith.mulf %22, %22 : vector<16x128xf32>
    %cst_29 = arith.constant dense<0.000000e+00> : vector<128xf32>
    %29 = vector.multi_reduction <add>, %28, %cst_29 [0] : vector<16x128xf32> to vector<128xf32>
    %30 = vector.shape_cast %29 : vector<128xf32> to vector<1x128xf32>
    %c0_30 = arith.constant 0 : index
    %c1_31 = arith.constant 1 : index
    %c0_32 = arith.constant 0 : index
    %31 = vector.load %arg5[%c0_30, %c1_31, %c0_32] : memref<1x2x128xf32, #tpu.memory_space<vmem>>, vector<1x1x128xf32>
    %32 = vector.shape_cast %31 : vector<1x1x128xf32> to vector<1x128xf32>
    %33 = vector.shape_cast %30 : vector<1x128xf32> to vector<1x1x128xf32>
    tpu.vector_store %arg5[%c0_30, %c1_31, %c0_32], %33 {strides = array<i32>} : memref<1x2x128xf32, #tpu.memory_space<vmem>>, vector<1x1x128xf32>,
    %c0_33 = arith.constant 0 : index
    %c0_34 = arith.constant 0 : index
    %c0_35 = arith.constant 0 : index
    %34 = vector.load %arg4[%c0_33, %c0_34, %c0_35] : memref<1x16x128xf32, #tpu.memory_space<vmem>>, vector<1x16x128xf32>
    %35 = vector.shape_cast %34 : vector<1x16x128xf32> to vector<16x128xf32>
    %36 = vector.shape_cast %22 : vector<16x128xf32> to vector<1x16x128xf32>
    tpu.vector_store %arg4[%c0_33, %c0_34, %c0_35], %36 {strides = array<i32>} : memref<1x16x128xf32, #tpu.memory_space<vmem>>, vector<1x16x128xf32>,
    %c0_36 = arith.constant 0 : index
    %c0_37 = arith.constant 0 : index
    %37 = vector.load %arg3[%c0_36, %c0_37] : memref<64x128xf32, #tpu.memory_space<vmem>>, vector<64x128xf32>
    %cst_38 = arith.constant dense<0.000000e+00> : vector<16x128xf32>
    %38 = tpu.matmul %1, %37, %cst_38 {dimension_numbers = #tpu.dot_dimension_numbers<[1], [0], [0], [1], [0, 0, 1, 1], [], []>} : vector<16x64xf32>, vector<64x128xf32>, vector<16x128xf32> -> vector<16x128xf32>
    %cst_39 = arith.constant dense<0.000000e+00> : vector<128xf32>
    %39 = vector.multi_reduction <add>, %38, %cst_39 [0] : vector<16x128xf32> to vector<128xf32>
    %40 = vector.shape_cast %39 : vector<128xf32> to vector<1x128xf32>
    %c0_40 = arith.constant 0 : index
    %c0_41 = arith.constant 0 : index
    %c0_42 = arith.constant 0 : index
    %41 = vector.load %arg7[%c0_40, %c0_41, %c0_42] : memref<1x2x128xf32, #tpu.memory_space<vmem>>, vector<1x1x128xf32>
    %42 = vector.shape_cast %41 : vector<1x1x128xf32> to vector<1x128xf32>
    %43 = vector.shape_cast %40 : vector<1x128xf32> to vector<1x1x128xf32>
    tpu.vector_store %arg7[%c0_40, %c0_41, %c0_42], %43 {strides = array<i32>} : memref<1x2x128xf32, #tpu.memory_space<vmem>>, vector<1x1x128xf32>,
    %44 = arith.mulf %38, %38 : vector<16x128xf32>
    %cst_43 = arith.constant dense<0.000000e+00> : vector<128xf32>
    %45 = vector.multi_reduction <add>, %44, %cst_43 [0] : vector<16x128xf32> to vector<128xf32>
    %46 = vector.shape_cast %45 : vector<128xf32> to vector<1x128xf32>
    %c0_44 = arith.constant 0 : index
    %c1_45 = arith.constant 1 : index
    %c0_46 = arith.constant 0 : index
    %47 = vector.load %arg7[%c0_44, %c1_45, %c0_46] : memref<1x2x128xf32, #tpu.memory_space<vmem>>, vector<1x1x128xf32>
    %48 = vector.shape_cast %47 : vector<1x1x128xf32> to vector<1x128xf32>
    %49 = vector.shape_cast %46 : vector<1x128xf32> to vector<1x1x128xf32>
    tpu.vector_store %arg7[%c0_44, %c1_45, %c0_46], %49 {strides = array<i32>} : memref<1x2x128xf32, #tpu.memory_space<vmem>>, vector<1x1x128xf32>,
    %c0_47 = arith.constant 0 : index
    %c0_48 = arith.constant 0 : index
    %c0_49 = arith.constant 0 : index
    %50 = vector.load %arg6[%c0_47, %c0_48, %c0_49] : memref<1x16x128xf32, #tpu.memory_space<vmem>>, vector<1x16x128xf32>
    %51 = vector.shape_cast %50 : vector<1x16x128xf32> to vector<16x128xf32>
    %52 = vector.shape_cast %38 : vector<16x128xf32> to vector<1x16x128xf32>
    tpu.vector_store %arg6[%c0_47, %c0_48, %c0_49], %52 {strides = array<i32>} : memref<1x16x128xf32, #tpu.memory_space<vmem>>, vector<1x16x128xf32>,
    return
  }
  func.func @transform_0(%arg0: i32) -> (i32, i32, i32) {
    %c0_i32 = arith.constant 0 : i32
    %c0_i32_0 = arith.constant 0 : i32
    %c0_i32_1 = arith.constant 0 : i32
    return %arg0, %c0_i32, %c0_i32_0 : i32, i32, i32
  }
  func.func @transform_1(%arg0: i32) -> (i32, i32, i32) {
    %c0_i32 = arith.constant 0 : i32
    %c0_i32_0 = arith.constant 0 : i32
    %c0_i32_1 = arith.constant 0 : i32
    %c0_i32_2 = arith.constant 0 : i32
    return %c0_i32, %c0_i32_0, %c0_i32_1 : i32, i32, i32
  }
  func.func @transform_2(%arg0: i32) -> (i32, i32) {
    %c0_i32 = arith.constant 0 : i32
    %c0_i32_0 = arith.constant 0 : i32
    %c0_i32_1 = arith.constant 0 : i32
    return %c0_i32, %c0_i32_0 : i32, i32
  }
  func.func @transform_3(%arg0: i32) -> (i32, i32, i32) {
    %c0_i32 = arith.constant 0 : i32
    %c0_i32_0 = arith.constant 0 : i32
    %c0_i32_1 = arith.constant 0 : i32
    return %arg0, %c0_i32, %c0_i32_0 : i32, i32, i32
  }
  func.func @transform_4(%arg0: i32) -> (i32, i32, i32) {
    %c0_i32 = arith.constant 0 : i32
    %c0_i32_0 = arith.constant 0 : i32
    %c0_i32_1 = arith.constant 0 : i32
    return %arg0, %c0_i32, %c0_i32_0 : i32, i32, i32
  }
  func.func @transform_5(%arg0: i32) -> (i32, i32, i32) {
    %c0_i32 = arith.constant 0 : i32
    %c0_i32_0 = arith.constant 0 : i32
    %c0_i32_1 = arith.constant 0 : i32
    return %arg0, %c0_i32, %c0_i32_0 : i32, i32, i32
  }
  func.func @transform_6(%arg0: i32) -> (i32, i32, i32) {
    %c0_i32 = arith.constant 0 : i32
    %c0_i32_0 = arith.constant 0 : i32
    %c0_i32_1 = arith.constant 0 : i32
    return %arg0, %c0_i32, %c0_i32_0 : i32, i32, i32
  }
}

module attributes {stable_mosaic.version = 11 : i64} {
  func.func @conv2_kernel(%arg0: i32, %arg1: memref<1x16x128xf32, #tpu.memory_space<vmem>>, %arg2: memref<3x128x128xf32, #tpu.memory_space<vmem>>, %arg3: memref<1x128xf32, #tpu.memory_space<vmem>>, %arg4: memref<1x128xf32, #tpu.memory_space<vmem>>, %arg5: memref<1x16x128xf32, #tpu.memory_space<vmem>>, %arg6: memref<1x2x128xf32, #tpu.memory_space<vmem>>, %arg7: memref<18x128xf32, #tpu.memory_space<vmem>>) attributes {dimension_semantics = [#tpu.dimension_semantics<parallel>], iteration_bounds = array<i64: 2>, scalar_prefetch = 0 : i64, scratch_operands = 1 : i64, tpu.core_type = #tpu.core_type<tc>, window_params = [{transform_indices = @transform_0, window_bounds = array<i64: 1, 16, 128>}, {pipeline_mode = #tpu.pipeline_mode<synchronous>, transform_indices = @transform_1, window_bounds = array<i64: 3, 128, 128>}, {pipeline_mode = #tpu.pipeline_mode<synchronous>, transform_indices = @transform_2, window_bounds = array<i64: 1, 128>}, {pipeline_mode = #tpu.pipeline_mode<synchronous>, transform_indices = @transform_3, window_bounds = array<i64: 1, 128>}, {transform_indices = @transform_4, window_bounds = array<i64: 1, 16, 128>}, {transform_indices = @transform_5, window_bounds = array<i64: 1, 2, 128>}]} {
    %c0 = arith.constant 0 : index
    %c0_0 = arith.constant 0 : index
    %c0_1 = arith.constant 0 : index
    %0 = vector.load %arg1[%c0, %c0_0, %c0_1] : memref<1x16x128xf32, #tpu.memory_space<vmem>>, vector<1x16x128xf32>
    %1 = vector.shape_cast %0 : vector<1x16x128xf32> to vector<16x128xf32>
    %c0_2 = arith.constant 0 : index
    %c0_3 = arith.constant 0 : index
    %2 = vector.load %arg3[%c0_2, %c0_3] : memref<1x128xf32, #tpu.memory_space<vmem>>, vector<1x128xf32>
    %3 = vector.broadcast %2 : vector<1x128xf32> to vector<16x128xf32>
    %4 = arith.mulf %1, %3 : vector<16x128xf32>
    %c0_4 = arith.constant 0 : index
    %c0_5 = arith.constant 0 : index
    %5 = vector.load %arg4[%c0_4, %c0_5] : memref<1x128xf32, #tpu.memory_space<vmem>>, vector<1x128xf32>
    %6 = vector.broadcast %5 : vector<1x128xf32> to vector<16x128xf32>
    %7 = arith.addf %4, %6 : vector<16x128xf32>
    %cst = arith.constant 0.000000e+00 : f32
    %8 = vector.broadcast %cst : f32 to vector<16x128xf32>
    %9 = arith.maximumf %7, %8 : vector<16x128xf32>
    %cst_6 = arith.constant 0.000000e+00 : f32
    %10 = vector.broadcast %cst_6 : f32 to vector<1x128xf32>
    %c0_7 = arith.constant 0 : index
    %c0_8 = arith.constant 0 : index
    %11 = vector.load %arg7[%c0_7, %c0_8] : memref<18x128xf32, #tpu.memory_space<vmem>>, vector<1x128xf32>
    tpu.vector_store %arg7[%c0_7, %c0_8], %10 {strides = array<i32>} : memref<18x128xf32, #tpu.memory_space<vmem>>, vector<1x128xf32>,
    %cst_9 = arith.constant 0.000000e+00 : f32
    %12 = vector.broadcast %cst_9 : f32 to vector<1x128xf32>
    %c17 = arith.constant 17 : index
    %c0_10 = arith.constant 0 : index
    %13 = vector.load %arg7[%c17, %c0_10] : memref<18x128xf32, #tpu.memory_space<vmem>>, vector<1x128xf32>
    tpu.vector_store %arg7[%c17, %c0_10], %12 {strides = array<i32>} : memref<18x128xf32, #tpu.memory_space<vmem>>, vector<1x128xf32>,
    %c1 = arith.constant 1 : index
    %c0_11 = arith.constant 0 : index
    %14 = vector.load %arg7[%c1, %c0_11] : memref<18x128xf32, #tpu.memory_space<vmem>>, vector<16x128xf32>
    tpu.vector_store %arg7[%c1, %c0_11], %9 {strides = array<i32>} : memref<18x128xf32, #tpu.memory_space<vmem>>, vector<16x128xf32>,
    %cst_12 = arith.constant 0.000000e+00 : f32
    %15 = vector.broadcast %cst_12 : f32 to vector<16x128xf32>
    %c0_13 = arith.constant 0 : index
    %c0_14 = arith.constant 0 : index
    %16 = vector.load %arg7[%c0_13, %c0_14] : memref<18x128xf32, #tpu.memory_space<vmem>>, vector<16x128xf32>
    %c0_15 = arith.constant 0 : index
    %c0_16 = arith.constant 0 : index
    %c0_17 = arith.constant 0 : index
    %17 = vector.load %arg2[%c0_15, %c0_16, %c0_17] : memref<3x128x128xf32, #tpu.memory_space<vmem>>, vector<1x128x128xf32>
    %18 = vector.shape_cast %17 : vector<1x128x128xf32> to vector<128x128xf32>
    %cst_18 = arith.constant dense<0.000000e+00> : vector<16x128xf32>
    %19 = tpu.matmul %16, %18, %cst_18 {dimension_numbers = #tpu.dot_dimension_numbers<[1], [0], [0], [1], [0, 0, 1, 1], [], []>} : vector<16x128xf32>, vector<128x128xf32>, vector<16x128xf32> -> vector<16x128xf32>
    %20 = arith.addf %15, %19 : vector<16x128xf32>
    %c1_19 = arith.constant 1 : index
    %c0_20 = arith.constant 0 : index
    %21 = vector.load %arg7[%c1_19, %c0_20] : memref<18x128xf32, #tpu.memory_space<vmem>>, vector<16x128xf32>
    %c1_21 = arith.constant 1 : index
    %c0_22 = arith.constant 0 : index
    %c0_23 = arith.constant 0 : index
    %22 = vector.load %arg2[%c1_21, %c0_22, %c0_23] : memref<3x128x128xf32, #tpu.memory_space<vmem>>, vector<1x128x128xf32>
    %23 = vector.shape_cast %22 : vector<1x128x128xf32> to vector<128x128xf32>
    %cst_24 = arith.constant dense<0.000000e+00> : vector<16x128xf32>
    %24 = tpu.matmul %21, %23, %cst_24 {dimension_numbers = #tpu.dot_dimension_numbers<[1], [0], [0], [1], [0, 0, 1, 1], [], []>} : vector<16x128xf32>, vector<128x128xf32>, vector<16x128xf32> -> vector<16x128xf32>
    %25 = arith.addf %20, %24 : vector<16x128xf32>
    %c2 = arith.constant 2 : index
    %c0_25 = arith.constant 0 : index
    %26 = vector.load %arg7[%c2, %c0_25] : memref<18x128xf32, #tpu.memory_space<vmem>>, vector<16x128xf32>
    %c2_26 = arith.constant 2 : index
    %c0_27 = arith.constant 0 : index
    %c0_28 = arith.constant 0 : index
    %27 = vector.load %arg2[%c2_26, %c0_27, %c0_28] : memref<3x128x128xf32, #tpu.memory_space<vmem>>, vector<1x128x128xf32>
    %28 = vector.shape_cast %27 : vector<1x128x128xf32> to vector<128x128xf32>
    %cst_29 = arith.constant dense<0.000000e+00> : vector<16x128xf32>
    %29 = tpu.matmul %26, %28, %cst_29 {dimension_numbers = #tpu.dot_dimension_numbers<[1], [0], [0], [1], [0, 0, 1, 1], [], []>} : vector<16x128xf32>, vector<128x128xf32>, vector<16x128xf32> -> vector<16x128xf32>
    %30 = arith.addf %25, %29 : vector<16x128xf32>
    %cst_30 = arith.constant dense<0.000000e+00> : vector<128xf32>
    %31 = vector.multi_reduction <add>, %30, %cst_30 [0] : vector<16x128xf32> to vector<128xf32>
    %32 = vector.shape_cast %31 : vector<128xf32> to vector<1x128xf32>
    %c0_31 = arith.constant 0 : index
    %c0_32 = arith.constant 0 : index
    %c0_33 = arith.constant 0 : index
    %33 = vector.load %arg6[%c0_31, %c0_32, %c0_33] : memref<1x2x128xf32, #tpu.memory_space<vmem>>, vector<1x1x128xf32>
    %34 = vector.shape_cast %33 : vector<1x1x128xf32> to vector<1x128xf32>
    %35 = vector.shape_cast %32 : vector<1x128xf32> to vector<1x1x128xf32>
    tpu.vector_store %arg6[%c0_31, %c0_32, %c0_33], %35 {strides = array<i32>} : memref<1x2x128xf32, #tpu.memory_space<vmem>>, vector<1x1x128xf32>,
    %36 = arith.mulf %30, %30 : vector<16x128xf32>
    %cst_34 = arith.constant dense<0.000000e+00> : vector<128xf32>
    %37 = vector.multi_reduction <add>, %36, %cst_34 [0] : vector<16x128xf32> to vector<128xf32>
    %38 = vector.shape_cast %37 : vector<128xf32> to vector<1x128xf32>
    %c0_35 = arith.constant 0 : index
    %c1_36 = arith.constant 1 : index
    %c0_37 = arith.constant 0 : index
    %39 = vector.load %arg6[%c0_35, %c1_36, %c0_37] : memref<1x2x128xf32, #tpu.memory_space<vmem>>, vector<1x1x128xf32>
    %40 = vector.shape_cast %39 : vector<1x1x128xf32> to vector<1x128xf32>
    %41 = vector.shape_cast %38 : vector<1x128xf32> to vector<1x1x128xf32>
    tpu.vector_store %arg6[%c0_35, %c1_36, %c0_37], %41 {strides = array<i32>} : memref<1x2x128xf32, #tpu.memory_space<vmem>>, vector<1x1x128xf32>,
    %c0_38 = arith.constant 0 : index
    %c0_39 = arith.constant 0 : index
    %c0_40 = arith.constant 0 : index
    %42 = vector.load %arg5[%c0_38, %c0_39, %c0_40] : memref<1x16x128xf32, #tpu.memory_space<vmem>>, vector<1x16x128xf32>
    %43 = vector.shape_cast %42 : vector<1x16x128xf32> to vector<16x128xf32>
    %44 = vector.shape_cast %30 : vector<16x128xf32> to vector<1x16x128xf32>
    tpu.vector_store %arg5[%c0_38, %c0_39, %c0_40], %44 {strides = array<i32>} : memref<1x16x128xf32, #tpu.memory_space<vmem>>, vector<1x16x128xf32>,
    return
  }
  func.func @transform_0(%arg0: i32) -> (i32, i32, i32) {
    %c0_i32 = arith.constant 0 : i32
    %c0_i32_0 = arith.constant 0 : i32
    %c0_i32_1 = arith.constant 0 : i32
    return %arg0, %c0_i32, %c0_i32_0 : i32, i32, i32
  }
  func.func @transform_1(%arg0: i32) -> (i32, i32, i32) {
    %c0_i32 = arith.constant 0 : i32
    %c0_i32_0 = arith.constant 0 : i32
    %c0_i32_1 = arith.constant 0 : i32
    %c0_i32_2 = arith.constant 0 : i32
    return %c0_i32, %c0_i32_0, %c0_i32_1 : i32, i32, i32
  }
  func.func @transform_2(%arg0: i32) -> (i32, i32) {
    %c0_i32 = arith.constant 0 : i32
    %c0_i32_0 = arith.constant 0 : i32
    %c0_i32_1 = arith.constant 0 : i32
    return %c0_i32, %c0_i32_0 : i32, i32
  }
  func.func @transform_3(%arg0: i32) -> (i32, i32) {
    %c0_i32 = arith.constant 0 : i32
    %c0_i32_0 = arith.constant 0 : i32
    %c0_i32_1 = arith.constant 0 : i32
    return %c0_i32, %c0_i32_0 : i32, i32
  }
  func.func @transform_4(%arg0: i32) -> (i32, i32, i32) {
    %c0_i32 = arith.constant 0 : i32
    %c0_i32_0 = arith.constant 0 : i32
    %c0_i32_1 = arith.constant 0 : i32
    return %arg0, %c0_i32, %c0_i32_0 : i32, i32, i32
  }
  func.func @transform_5(%arg0: i32) -> (i32, i32, i32) {
    %c0_i32 = arith.constant 0 : i32
    %c0_i32_0 = arith.constant 0 : i32
    %c0_i32_1 = arith.constant 0 : i32
    return %arg0, %c0_i32, %c0_i32_0 : i32, i32, i32
  }
}

module attributes {stable_mosaic.version = 11 : i64} {
  func.func @bn_add_relu_kernel(%arg0: i32, %arg1: memref<16x128xf32, #tpu.memory_space<vmem>>, %arg2: memref<16x128xf32, #tpu.memory_space<vmem>>, %arg3: memref<1x128xf32, #tpu.memory_space<vmem>>, %arg4: memref<1x128xf32, #tpu.memory_space<vmem>>, %arg5: memref<1x128xf32, #tpu.memory_space<vmem>>, %arg6: memref<1x128xf32, #tpu.memory_space<vmem>>, %arg7: memref<16x128xf32, #tpu.memory_space<vmem>>) attributes {dimension_semantics = [#tpu.dimension_semantics<parallel>], iteration_bounds = array<i64: 2>, scalar_prefetch = 0 : i64, scratch_operands = 0 : i64, tpu.core_type = #tpu.core_type<tc>, window_params = [{transform_indices = @transform_0, window_bounds = array<i64: 16, 128>}, {transform_indices = @transform_1, window_bounds = array<i64: 16, 128>}, {pipeline_mode = #tpu.pipeline_mode<synchronous>, transform_indices = @transform_2, window_bounds = array<i64: 1, 128>}, {pipeline_mode = #tpu.pipeline_mode<synchronous>, transform_indices = @transform_3, window_bounds = array<i64: 1, 128>}, {pipeline_mode = #tpu.pipeline_mode<synchronous>, transform_indices = @transform_4, window_bounds = array<i64: 1, 128>}, {pipeline_mode = #tpu.pipeline_mode<synchronous>, transform_indices = @transform_5, window_bounds = array<i64: 1, 128>}, {transform_indices = @transform_6, window_bounds = array<i64: 16, 128>}]} {
    %c0 = arith.constant 0 : index
    %c0_0 = arith.constant 0 : index
    %0 = vector.load %arg1[%c0, %c0_0] : memref<16x128xf32, #tpu.memory_space<vmem>>, vector<16x128xf32>
    %c0_1 = arith.constant 0 : index
    %c0_2 = arith.constant 0 : index
    %1 = vector.load %arg3[%c0_1, %c0_2] : memref<1x128xf32, #tpu.memory_space<vmem>>, vector<1x128xf32>
    %2 = vector.broadcast %1 : vector<1x128xf32> to vector<16x128xf32>
    %3 = arith.mulf %0, %2 : vector<16x128xf32>
    %c0_3 = arith.constant 0 : index
    %c0_4 = arith.constant 0 : index
    %4 = vector.load %arg4[%c0_3, %c0_4] : memref<1x128xf32, #tpu.memory_space<vmem>>, vector<1x128xf32>
    %5 = vector.broadcast %4 : vector<1x128xf32> to vector<16x128xf32>
    %6 = arith.addf %3, %5 : vector<16x128xf32>
    %c0_5 = arith.constant 0 : index
    %c0_6 = arith.constant 0 : index
    %7 = vector.load %arg2[%c0_5, %c0_6] : memref<16x128xf32, #tpu.memory_space<vmem>>, vector<16x128xf32>
    %c0_7 = arith.constant 0 : index
    %c0_8 = arith.constant 0 : index
    %8 = vector.load %arg5[%c0_7, %c0_8] : memref<1x128xf32, #tpu.memory_space<vmem>>, vector<1x128xf32>
    %9 = vector.broadcast %8 : vector<1x128xf32> to vector<16x128xf32>
    %10 = arith.mulf %7, %9 : vector<16x128xf32>
    %c0_9 = arith.constant 0 : index
    %c0_10 = arith.constant 0 : index
    %11 = vector.load %arg6[%c0_9, %c0_10] : memref<1x128xf32, #tpu.memory_space<vmem>>, vector<1x128xf32>
    %12 = vector.broadcast %11 : vector<1x128xf32> to vector<16x128xf32>
    %13 = arith.addf %10, %12 : vector<16x128xf32>
    %14 = arith.addf %6, %13 : vector<16x128xf32>
    %cst = arith.constant 0.000000e+00 : f32
    %15 = vector.broadcast %cst : f32 to vector<16x128xf32>
    %16 = arith.maximumf %14, %15 : vector<16x128xf32>
    %c0_11 = arith.constant 0 : index
    %c0_12 = arith.constant 0 : index
    %17 = vector.load %arg7[%c0_11, %c0_12] : memref<16x128xf32, #tpu.memory_space<vmem>>, vector<16x128xf32>
    tpu.vector_store %arg7[%c0_11, %c0_12], %16 {strides = array<i32>} : memref<16x128xf32, #tpu.memory_space<vmem>>, vector<16x128xf32>,
    return
  }
  func.func @transform_0(%arg0: i32) -> (i32, i32) {
    %c0_i32 = arith.constant 0 : i32
    %c0_i32_0 = arith.constant 0 : i32
    return %arg0, %c0_i32 : i32, i32
  }
  func.func @transform_1(%arg0: i32) -> (i32, i32) {
    %c0_i32 = arith.constant 0 : i32
    %c0_i32_0 = arith.constant 0 : i32
    return %arg0, %c0_i32 : i32, i32
  }
  func.func @transform_2(%arg0: i32) -> (i32, i32) {
    %c0_i32 = arith.constant 0 : i32
    %c0_i32_0 = arith.constant 0 : i32
    %c0_i32_1 = arith.constant 0 : i32
    return %c0_i32, %c0_i32_0 : i32, i32
  }
  func.func @transform_3(%arg0: i32) -> (i32, i32) {
    %c0_i32 = arith.constant 0 : i32
    %c0_i32_0 = arith.constant 0 : i32
    %c0_i32_1 = arith.constant 0 : i32
    return %c0_i32, %c0_i32_0 : i32, i32
  }
  func.func @transform_4(%arg0: i32) -> (i32, i32) {
    %c0_i32 = arith.constant 0 : i32
    %c0_i32_0 = arith.constant 0 : i32
    %c0_i32_1 = arith.constant 0 : i32
    return %c0_i32, %c0_i32_0 : i32, i32
  }
  func.func @transform_5(%arg0: i32) -> (i32, i32) {
    %c0_i32 = arith.constant 0 : i32
    %c0_i32_0 = arith.constant 0 : i32
    %c0_i32_1 = arith.constant 0 : i32
    return %c0_i32, %c0_i32_0 : i32, i32
  }
  func.func @transform_6(%arg0: i32) -> (i32, i32) {
    %c0_i32 = arith.constant 0 : i32
    %c0_i32_0 = arith.constant 0 : i32
    return %arg0, %c0_i32 : i32, i32
  }
}

</mosaic_0001>

<llo_original>
// kernel: tile.34
$region0: #{tile.34}
  %s0 = inlined_call_operand.vmem [shape: f32[16,8], index: 0, kind: input, shape index: {}]
  %s1 = inlined_call_operand.vmem [shape: f32[1,128], index: 1, kind: output, shape index: {}]
  $region1: #{tile.34} parent=0
    #allocation0 [shape = 'u8[4096]{0}', space=vmem, size = 0x1000, scoped, tag = 'scoped mem for output reshape']
    %v2 = vld [vmem:[%s0] sm:$0x1]
    %vm3 = vcmask 64512
    %4 = vst.msk [vmem:[#allocation0] sm:$0x1] %vm3, %v2
    %s5 = scalar_lea.vmem %s0, 15
    %v6 = vld [vmem:[%s5] sm:$0x1]
    %7 = vrot.lane.b32.xlu0 %v6, 120
    %v8 = vpop.permute.xlu0 %7
    %vm9 = vcmask 1048512
    %10 = vst.msk [vmem:[#allocation0] sm:$0x1] %vm9, %v8
    %s11 = scalar_lea.vmem %s0, 14
    %v12 = vld [vmem:[%s11] sm:$0x1]
    %13 = vrot.lane.b32.xlu0 %v12, 112
    %v14 = vpop.permute.xlu0 %13
    %vm15 = vcmask 982912
    %16 = vst.msk [vmem:[#allocation0] sm:$0x1] %vm15, %v14
    %s17 = scalar_lea.vmem %s0, 13
    %v18 = vld [vmem:[%s17] sm:$0x1]
    %19 = vrot.lane.b32.xlu0 %v18, 104
    %v20 = vpop.permute.xlu0 %19
    %vm21 = vcmask 917312
    %22 = vst.msk [vmem:[#allocation0] sm:$0x1] %vm21, %v20
    %s23 = scalar_lea.vmem %s0, 12
    %v24 = vld [vmem:[%s23] sm:$0x1]
    %25 = vrot.lane.b32.xlu0 %v24, 96
    %v26 = vpop.permute.xlu0 %25
    %vm27 = vcmask 851712
    %28 = vst.msk [vmem:[#allocation0] sm:$0x1] %vm27, %v26
    %s29 = scalar_lea.vmem %s0, 11
    %v30 = vld [vmem:[%s29] sm:$0x1]
    %31 = vrot.lane.b32.xlu0 %v30, 88
    %v32 = vpop.permute.xlu0 %31
    %vm33 = vcmask 786112
    %34 = vst.msk [vmem:[#allocation0] sm:$0x1] %vm33, %v32
    %s35 = scalar_lea.vmem %s0, 10
    %v36 = vld [vmem:[%s35] sm:$0x1]
    %37 = vrot.lane.b32.xlu0 %v36, 80
    %v38 = vpop.permute.xlu0 %37
    %vm39 = vcmask 720512
    %40 = vst.msk [vmem:[#allocation0] sm:$0x1] %vm39, %v38
    %s41 = scalar_lea.vmem %s0, 9
    %v42 = vld [vmem:[%s41] sm:$0x1]
    %43 = vrot.lane.b32.xlu0 %v42, 72
    %v44 = vpop.permute.xlu0 %43
    %vm45 = vcmask 654912
    %46 = vst.msk [vmem:[#allocation0] sm:$0x1] %vm45, %v44
    %s47 = scalar_lea.vmem %s0, 8
    %v48 = vld [vmem:[%s47] sm:$0x1]
    %49 = vrot.lane.b32.xlu0 %v48, 64
    %v50 = vpop.permute.xlu0 %49
    %vm51 = vcmask 589312
    %52 = vst.msk [vmem:[#allocation0] sm:$0x1] %vm51, %v50
    %s53 = scalar_lea.vmem %s0, 7
    %v54 = vld [vmem:[%s53] sm:$0x1]
    %55 = vrot.lane.b32.xlu0 %v54, 56
    %v56 = vpop.permute.xlu0 %55
    %vm57 = vcmask 523712
    %58 = vst.msk [vmem:[#allocation0] sm:$0x1] %vm57, %v56
    %s59 = scalar_lea.vmem %s0, 6
    %v60 = vld [vmem:[%s59] sm:$0x1]
    %61 = vrot.lane.b32.xlu0 %v60, 48
    %v62 = vpop.permute.xlu0 %61
    %vm63 = vcmask 458112
    %64 = vst.msk [vmem:[#allocation0] sm:$0x1] %vm63, %v62
    %s65 = scalar_lea.vmem %s0, 5
    %v66 = vld [vmem:[%s65] sm:$0x1]
    %67 = vrot.lane.b32.xlu0 %v66, 40
    %v68 = vpop.permute.xlu0 %67
    %vm69 = vcmask 392512
    %70 = vst.msk [vmem:[#allocation0] sm:$0x1] %vm69, %v68
    %s71 = scalar_lea.vmem %s0, 4
    %v72 = vld [vmem:[%s71] sm:$0x1]
    %73 = vrot.lane.b32.xlu0 %v72, 32
    %v74 = vpop.permute.xlu0 %73
    %vm75 = vcmask 326912
    %76 = vst.msk [vmem:[#allocation0] sm:$0x1] %vm75, %v74
    %s77 = scalar_lea.vmem %s0, 3
    %v78 = vld [vmem:[%s77] sm:$0x1]
    %79 = vrot.lane.b32.xlu0 %v78, 24
    %v80 = vpop.permute.xlu0 %79
    %vm81 = vcmask 261312
    %82 = vst.msk [vmem:[#allocation0] sm:$0x1] %vm81, %v80
    %s83 = scalar_lea.vmem %s0, 2
    %v84 = vld [vmem:[%s83] sm:$0x1]
    %85 = vrot.lane.b32.xlu0 %v84, 16
    %v86 = vpop.permute.xlu0 %85
    %vm87 = vcmask 195712
    %88 = vst.msk [vmem:[#allocation0] sm:$0x1] %vm87, %v86
    %s89 = scalar_lea.vmem %s0, 1
    %v90 = vld [vmem:[%s89] sm:$0x1]
    %91 = vrot.lane.b32.xlu0 %v90, 8
    %v92 = vpop.permute.xlu0 %91
    %vm93 = vcmask 130112
    %94 = vst.msk [vmem:[#allocation0] sm:$0x1] %vm93, %v92
    %s96 = sshllo.u32 0, 1
    %v98 = vld [vmem:[#allocation0] sm:%s96]
    %s99 = sshllo.u32 0, 1
    %100 = vst [vmem:[%s1] sm:%s99] %v98

// kernel: tile.33
$region0: #{tile.33}
  #allocation0 [shape = 's32[1]{0}', space=sflag, size = 0x4, scoped, tag = 'scoped memory for tile.33']
  %s0 = inlined_call_operand.vmem [shape: f32[8], index: 0, kind: input, shape index: {}]
  %s1 = inlined_call_operand.vmem [shape: f32[16,8], index: 1, kind: output, shape index: {}]
  // Predicated region
  $region2: #{tile.33} parent=0 // pred_check
    _
  $region3: #{tile.33} parent=0 // pred_check_branch
    %3 = sbr.rel (0) target = $region5
  $region4: #{tile.33} parent=0 // pred_region
    _
  $region5: #{tile.33} parent=0 // pred_fallthru
    _
  %v4 = vld [vmem:[%s0] ss:$0 sm:$0xff]
  %5 = vst [vmem:[%s1] sm:$0xff] %v4
  %s6 = scalar_lea.vmem %s1, 8
  %7 = vst [vmem:[%s6] sm:$0xff] %v4

// kernel: residual_block.3
$region0: #{residual_block.3}
  #allocation0 [shape = 'u32[]', space=smem, size = 0x4, offset = 0x4, fixed_abs, tag = 'smem constant byte address 0x4 - core index']
  #allocation1 [shape = 'u32[144,128]{1,0:T(1,128)}', space=vmem, size = 0x12000, scoped, tag = 'internal scratch']
  #allocation2 [shape = 'f32[18,64]{1,0:T(8,128)}', space=vmem, size = 0x3000, scoped, tag = 'scratch operand']
  %s0 = inlined_call_operand.vmem [shape: f32[2,16,64], index: 0, kind: input, shape index: {}]
  %s1 = inlined_call_operand.vmem [shape: f32[3,64,128], index: 1, kind: input, shape index: {}]
  %s2 = inlined_call_operand.vmem [shape: f32[64,128], index: 2, kind: input, shape index: {}]
  %s3 = inlined_call_operand.vmem [shape: f32[2,16,128], index: 3, kind: output, shape index: {0}]
  %s4 = inlined_call_operand.vmem [shape: f32[2,2,128], index: 4, kind: output, shape index: {1}]
  %s5 = inlined_call_operand.vmem [shape: f32[2,16,128], index: 5, kind: output, shape index: {2}]
  %s6 = inlined_call_operand.vmem [shape: f32[2,2,128], index: 6, kind: output, shape index: {3}]
  %7 = xla_tuple %s3, %s4, %s5, %s6
  %s8 = sld [smem:[#allocation0]]
  $region69: #{residual_block.3} parent=0
    _
  %s10 = ssub.s32 1, %s8
  %s11 = scalar_select 0, %s10, %s8
  loop: start=0, step=1, limit=4
  $region2: #{residual_block.3} parent=0 // loop_pre_header
    _
  $region3: #{residual_block.3} parent=0 // loop_header
    %s13 = sphi 0, %s17
    %p14 = scmp.ge.s32.totalorder %s13, 4
    %s23 = sphi 0, %s25
    %s26 = sphi 0, %s23
    %s27 = sphi 0, %s26
    %s43 = sphi 0, %s27
    %s47 = sphi 0, %s47
    %s49 = sphi 0, %s47
    %s50 = sphi 0, %s49
    %s64 = sphi 0, %s50
    %s68 = sphi 0, %s68
    %s70 = sphi 0, %s68
    %s71 = sphi 0, %s70
    %s85 = sphi 0, %s71
    %s91 = sphi 0, %s93
    %s94 = sphi 0, %s91
    %s95 = sphi 0, %s94
    %s111 = sphi 0, %s95
    %s117 = sphi 0, %s119
    %s120 = sphi 0, %s117
    %s121 = sphi 0, %s120
    %s137 = sphi 0, %s121
    %s143 = sphi 0, %s145
    %s146 = sphi 0, %s143
    %s147 = sphi 0, %s146
    %s163 = sphi 0, %s147
    %s169 = sphi 0, %s171
    %s172 = sphi 0, %s169
    %s173 = sphi 0, %s172
    %s189 = sphi 0, %s173
  $region4: #{residual_block.3} parent=0 // loop_header_branch
    %16 = sbr.rel (%p14) target = $region8
  $region5: #{residual_block.3} parent=0 // loop_body
    %s18 = ssub.s32 %s13, 1
    %s19 = ssub.s32 %s13, 2
    %s20 = sadd.s32 %s13, 1
    %s21 = ssub.s32 %s13, %s20
    %p22 = scmp.eq.s32.totalorder %s21, 0
    %s24 = sadd.s32 %s23, 1
    %s25 = scalar_select %p22, %s23, %s24
    %p28 = pneg %p22
    %p29 = scmp.eq.s32.totalorder %s13, 1
    %p30 = por %p28, %p29
    %p31 = scmp.ne.s32.totalorder %s23, %s26
    %p32 = scmp.eq.s32.totalorder %s13, 0
    %p33 = por %p31, %p32
    %p34 = scmp.ne.s32.totalorder %s23, %s26
    %p35 = scmp.eq.s32.totalorder %s18, 1
    %p36 = por %p34, %p35
    %p37 = scmp.ne.s32.totalorder %s26, %s27
    %p38 = scmp.eq.s32.totalorder %s18, 0
    %p39 = por %p37, %p38
    %p40 = scmp.ne.s32.totalorder %s26, %s27
    %p41 = scmp.eq.s32.totalorder %s19, 1
    %p42 = por %p40, %p41
    %p44 = scmp.ne.s32.totalorder %s27, %s43
    %p45 = scmp.eq.s32.totalorder %s19, 0
    %p46 = por %p44, %p45
    %s48 = sadd.s32 %s47, 1
    %p51 = scmp.eq.s32.totalorder %s13, 1
    %p52 = scmp.ne.s32.totalorder %s47, %s49
    %p53 = scmp.eq.s32.totalorder %s13, 0
    %p54 = por %p52, %p53
    %p55 = scmp.ne.s32.totalorder %s47, %s49
    %p56 = scmp.eq.s32.totalorder %s18, 1
    %p57 = por %p55, %p56
    %p58 = scmp.ne.s32.totalorder %s49, %s50
    %p59 = scmp.eq.s32.totalorder %s18, 0
    %p60 = por %p58, %p59
    %p61 = scmp.ne.s32.totalorder %s49, %s50
    %p62 = scmp.eq.s32.totalorder %s19, 1
    %p63 = por %p61, %p62
    %p65 = scmp.ne.s32.totalorder %s50, %s64
    %p66 = scmp.eq.s32.totalorder %s19, 0
    %p67 = por %p65, %p66
    %s69 = sadd.s32 %s68, 1
    %p72 = scmp.eq.s32.totalorder %s13, 1
    %p73 = scmp.ne.s32.totalorder %s68, %s70
    %p74 = scmp.eq.s32.totalorder %s13, 0
    %p75 = por %p73, %p74
    %p76 = scmp.ne.s32.totalorder %s68, %s70
    %p77 = scmp.eq.s32.totalorder %s18, 1
    %p78 = por %p76, %p77
    %p79 = scmp.ne.s32.totalorder %s70, %s71
    %p80 = scmp.eq.s32.totalorder %s18, 0
    %p81 = por %p79, %p80
    %p82 = scmp.ne.s32.totalorder %s70, %s71
    %p83 = scmp.eq.s32.totalorder %s19, 1
    %p84 = por %p82, %p83
    %p86 = scmp.ne.s32.totalorder %s71, %s85
    %p87 = scmp.eq.s32.totalorder %s19, 0
    %p88 = por %p86, %p87
    %s89 = ssub.s32 %s13, %s20
    %p90 = scmp.eq.s32.totalorder %s89, 0
    %s92 = sadd.s32 %s91, 1
    %s93 = scalar_select %p90, %s91, %s92
    %p96 = pneg %p90
    %p97 = scmp.eq.s32.totalorder %s13, 1
    %p98 = por %p96, %p97
    %p99 = scmp.ne.s32.totalorder %s91, %s94
    %p100 = scmp.eq.s32.totalorder %s13, 0
    %p101 = por %p99, %p100
    %p102 = scmp.ne.s32.totalorder %s91, %s94
    %p103 = scmp.eq.s32.totalorder %s18, 1
    %p104 = por %p102, %p103
    %p105 = scmp.ne.s32.totalorder %s94, %s95
    %p106 = scmp.eq.s32.totalorder %s18, 0
    %p107 = por %p105, %p106
    %p108 = scmp.ne.s32.totalorder %s94, %s95
    %p109 = scmp.eq.s32.totalorder %s19, 1
    %p110 = por %p108, %p109
    %p112 = scmp.ne.s32.totalorder %s95, %s111
    %p113 = scmp.eq.s32.totalorder %s19, 0
    %p114 = por %p112, %p113
    %s115 = ssub.s32 %s13, %s20
    %p116 = scmp.eq.s32.totalorder %s115, 0
    %s118 = sadd.s32 %s117, 1
    %s119 = scalar_select %p116, %s117, %s118
    %p122 = pneg %p116
    %p123 = scmp.eq.s32.totalorder %s13, 1
    %p124 = por %p122, %p123
    %p125 = scmp.ne.s32.totalorder %s117, %s120
    %p126 = scmp.eq.s32.totalorder %s13, 0
    %p127 = por %p125, %p126
    %p128 = scmp.ne.s32.totalorder %s117, %s120
    %p129 = scmp.eq.s32.totalorder %s18, 1
    %p130 = por %p128, %p129
    %p131 = scmp.ne.s32.totalorder %s120, %s121
    %p132 = scmp.eq.s32.totalorder %s18, 0
    %p133 = por %p131, %p132
    %p134 = scmp.ne.s32.totalorder %s120, %s121
    %p135 = scmp.eq.s32.totalorder %s19, 1
    %p136 = por %p134, %p135
    %p138 = scmp.ne.s32.totalorder %s121, %s137
    %p139 = scmp.eq.s32.totalorder %s19, 0
    %p140 = por %p138, %p139
    %s141 = ssub.s32 %s13, %s20
    %p142 = scmp.eq.s32.totalorder %s141, 0
    %s144 = sadd.s32 %s143, 1
    %s145 = scalar_select %p142, %s143, %s144
    %p148 = pneg %p142
    %p149 = scmp.eq.s32.totalorder %s13, 1
    %p150 = por %p148, %p149
    %p151 = scmp.ne.s32.totalorder %s143, %s146
    %p152 = scmp.eq.s32.totalorder %s13, 0
    %p153 = por %p151, %p152
    %p154 = scmp.ne.s32.totalorder %s143, %s146
    %p155 = scmp.eq.s32.totalorder %s18, 1
    %p156 = por %p154, %p155
    %p157 = scmp.ne.s32.totalorder %s146, %s147
    %p158 = scmp.eq.s32.totalorder %s18, 0
    %p159 = por %p157, %p158
    %p160 = scmp.ne.s32.totalorder %s146, %s147
    %p161 = scmp.eq.s32.totalorder %s19, 1
    %p162 = por %p160, %p161
    %p164 = scmp.ne.s32.totalorder %s147, %s163
    %p165 = scmp.eq.s32.totalorder %s19, 0
    %p166 = por %p164, %p165
    %s167 = ssub.s32 %s13, %s20
    %p168 = scmp.eq.s32.totalorder %s167, 0
    %s170 = sadd.s32 %s169, 1
    %s171 = scalar_select %p168, %s169, %s170
    %p174 = pneg %p168
    %p175 = scmp.eq.s32.totalorder %s13, 1
    %p176 = por %p174, %p175
    %p177 = scmp.ne.s32.totalorder %s169, %s172
    %p178 = scmp.eq.s32.totalorder %s13, 0
    %p179 = por %p177, %p178
    %p180 = scmp.ne.s32.totalorder %s169, %s172
    %p181 = scmp.eq.s32.totalorder %s18, 1
    %p182 = por %p180, %p181
    %p183 = scmp.ne.s32.totalorder %s172, %s173
    %p184 = scmp.eq.s32.totalorder %s18, 0
    %p185 = por %p183, %p184
    %p186 = scmp.ne.s32.totalorder %s172, %s173
    %p187 = scmp.eq.s32.totalorder %s19, 1
    %p188 = por %p186, %p187
    %p190 = scmp.ne.s32.totalorder %s173, %s189
    %p191 = scmp.eq.s32.totalorder %s19, 0
    %p192 = por %p190, %p191
    %p193 = scmp.le.s32.totalorder 1, %s13
    %p194 = scmp.lt.s32.totalorder %s13, 3
    %p195 = pnand %p193, %p194
    %p196 = pneg %p195
    // Predicated region
    $region9: #{residual_block.3} parent=5 // pred_check
      _
    $region10: #{residual_block.3} parent=5 // pred_check_branch
      %198 = sbr.rel (%p195) target = $region12
    $region11: #{residual_block.3} parent=5 // pred_region
      %s199 = ssub.s32 %s13, 1
      // Predicated region
      $region13: #{residual_block.3} parent=11 // pred_check
        %p200 = pneg %p60
      $region14: #{residual_block.3} parent=11 // pred_check_branch
        %202 = sbr.rel (%p200) target = $region16
      $region15: #{residual_block.3} parent=11 // pred_region
        _
      $region16: #{residual_block.3} parent=11 // pred_fallthru
        _
      // Predicated region
      $region17: #{residual_block.3} parent=11 // pred_check
        %p203 = pneg %p81
      $region18: #{residual_block.3} parent=11 // pred_check_branch
        %205 = sbr.rel (%p203) target = $region20
      $region19: #{residual_block.3} parent=11 // pred_region
        _
      $region20: #{residual_block.3} parent=11 // pred_fallthru
        _
    $region12: #{residual_block.3} parent=5 // pred_fallthru
      _
    %p206 = scmp.lt.s32.totalorder %s13, 2
    // Predicated region
    $region21: #{residual_block.3} parent=5 // pred_check
      %p207 = pneg %p206
    $region22: #{residual_block.3} parent=5 // pred_check_branch
      %209 = sbr.rel (%p207) target = $region24
    $region23: #{residual_block.3} parent=5 // pred_region
      // Predicated region
      $region25: #{residual_block.3} parent=23 // pred_check
        %p210 = pneg %p33
      $region26: #{residual_block.3} parent=23 // pred_check_branch
        %212 = sbr.rel (%p210) target = $region28
      $region27: #{residual_block.3} parent=23 // pred_region
        %p213 = scmp.lt.s32.totalorder %s13, 1
        %s214 = scalar_select %p213, %s13, 1
        %s215 = smul.addr %s214, 2
        %s216 = smul.addr %s215, 8
        %s217 = scalar_lea.vmem %s0, %s216
      $region28: #{residual_block.3} parent=23 // pred_fallthru
        _
    $region24: #{residual_block.3} parent=5 // pred_fallthru
      _
    %p218 = scmp.le.s32.totalorder 1, %s13
    %p219 = scmp.lt.s32.totalorder %s13, 3
    %p220 = pnand %p218, %p219
    %p221 = pneg %p220
    // Predicated region
    $region29: #{residual_block.3} parent=5 // pred_check
      _
    $region30: #{residual_block.3} parent=5 // pred_check_branch
      %223 = sbr.rel (%p220) target = $region32
    $region31: #{residual_block.3} parent=5 // pred_region
      %s224 = ssub.s32 %s13, 1
      %p225 = scmp.lt.s32.totalorder %s18, 1
      %s226 = scalar_select %p225, %s18, 1
      %s227 = smul.addr %s226, 2
      %s228 = smul.addr %s227, 8
      %s229 = scalar_lea.vmem %s0, %s228
      %p230 = pneg %p39
      %p231 = pneg %p36
      %p232 = pneg %p60
      %p233 = pneg %p57
      %p234 = pneg %p81
      %p235 = pneg %p78
      %p236 = pneg %p107
      %p237 = pneg %p104
      %p238 = scmp.lt.s32.totalorder %s18, 1
      %s239 = scalar_select %p238, %s18, 1
      %s240 = smul.addr %s239, 2
      %s241 = smul.addr %s240, 8
      %s242 = scalar_lea.vmem %s3, %s241
      %p243 = pneg %p133
      %p244 = pneg %p130
      %p245 = scmp.lt.s32.totalorder %s18, 1
      %s246 = scalar_select %p245, %s18, 1
      %s247 = smul.addr %s246, 2
      %s248 = scalar_lea.vmem %s4, %s247
      %p249 = pneg %p159
      %p250 = pneg %p156
      %p251 = scmp.lt.s32.totalorder %s18, 1
      %s252 = scalar_select %p251, %s18, 1
      %s253 = smul.addr %s252, 2
      %s254 = smul.addr %s253, 8
      %s255 = scalar_lea.vmem %s5, %s254
      %p256 = pneg %p185
      %p257 = pneg %p182
      %p258 = scmp.lt.s32.totalorder %s18, 1
      %s259 = scalar_select %p258, %s18, 1
      %s260 = smul.addr %s259, 2
      %s261 = scalar_lea.vmem %s6, %s260
      %p262 = scmp.lt.s32.totalorder %s18, 1
      %s263 = scalar_select %p262, %s18, 1
      %s264 = smul.addr %s263, 2
      %s265 = smul.addr %s264, 8
      %s266 = scalar_lea.vmem %s0, %s265
      %p267 = scmp.lt.s32.totalorder %s18, 1
      %s268 = scalar_select %p267, %s18, 1
      %s269 = smul.addr %s268, 2
      %s270 = smul.addr %s269, 8
      %s271 = scalar_lea.vmem %s3, %s270
      %p272 = scmp.lt.s32.totalorder %s18, 1
      %s273 = scalar_select %p272, %s18, 1
      %s274 = smul.addr %s273, 2
      %s275 = scalar_lea.vmem %s4, %s274
      %p276 = scmp.lt.s32.totalorder %s18, 1
      %s277 = scalar_select %p276, %s18, 1
      %s278 = smul.addr %s277, 2
      %s279 = smul.addr %s278, 8
      %s280 = scalar_lea.vmem %s5, %s279
      %p281 = scmp.lt.s32.totalorder %s18, 1
      %s282 = scalar_select %p281, %s18, 1
      %s283 = smul.addr %s282, 2
      %s284 = scalar_lea.vmem %s6, %s283
      %v285 = vld [vmem:[%s266] sm:$0xff]
      %v286 = vld [vmem:[%s266 + $0x8] sm:$0xff]
      %vm287 = vcmask 516096
      %288 = vst.msk [vmem:[#allocation2] sm:$0x1] %vm287, 0.0
      %289 = vst.msk [vmem:[#allocation2 + $0x11] sm:$0x1] %vm287, 0.0
      %vm290 = vcmask 523264
      %291 = vst.msk [vmem:[#allocation2 + $0x1] sm:$0xff] %vm290, %v285
      %292 = vst.msk [vmem:[#allocation2 + $0x9] sm:$0xff] %vm290, %v286
      %v293 = vld [vmem:[#allocation2] sm:$0xff]
      %v294 = vld [vmem:[#allocation2 + $0x8] sm:$0xff]
      %v295 = vld [vmem:[%s1] sm:$0xff]
      %v296 = vld [vmem:[%s1 + $0x8] sm:$0xff]
      %v297 = vld [vmem:[%s1 + $0x10] sm:$0xff]
      %v298 = vld [vmem:[%s1 + $0x18] sm:$0xff]
      %v299 = vld [vmem:[%s1 + $0x20] sm:$0xff]
      %v300 = vld [vmem:[%s1 + $0x28] sm:$0xff]
      %v301 = vld [vmem:[%s1 + $0x30] sm:$0xff]
      %v302 = vld [vmem:[%s1 + $0x38] sm:$0xff]
      %v303 = vld [vmem:[#allocation2 + $0x1] sm:$0xff]
      %v304 = vld [vmem:[#allocation2 + $0x9] sm:$0xff]
      %s305 = scalar_lea.vmem %s1, 64
      %v306 = vld [vmem:[%s305] sm:$0xff]
      %v307 = vld [vmem:[%s305 + $0x8] sm:$0xff]
      %v308 = vld [vmem:[%s305 + $0x10] sm:$0xff]
      %v309 = vld [vmem:[%s305 + $0x18] sm:$0xff]
      %v310 = vld [vmem:[%s305 + $0x20] sm:$0xff]
      %v311 = vld [vmem:[%s305 + $0x28] sm:$0xff]
      %v312 = vld [vmem:[%s305 + $0x30] sm:$0xff]
      %v313 = vld [vmem:[%s305 + $0x38] sm:$0xff]
      %v315 = vsel %vm290, %v303, 0
      %v318 = vsel %vm290, %v304, 0
      %320 = vmatprep.subr.mxu0 0.0
      %321 = vmatpush1.msra.mxu0 %v306
      %322 = vmatprep.subr.mxu0 0.0
      %323 = vmatpush1.msra.mxu0 %v307
      %324 = vmatprep.subr.mxu0 0.0
      %325 = vmatpush1.msra.mxu0 %v308
      %326 = vmatprep.subr.mxu0 0.0
      %327 = vmatpush1.msra.mxu0 %v309
      %328 = vmatprep.subr.mxu0 0.0
      %329 = vmatpush1.msra.mxu0 %v310
      %330 = vmatprep.subr.mxu0 0.0
      %331 = vmatpush1.msra.mxu0 %v311
      %332 = vmatprep.subr.mxu0 0.0
      %333 = vmatpush1.msra.mxu0 %v312
      %334 = vmatprep.subr.mxu0 0.0
      %335 = vmatpush1.msra.mxu0 %v313
      %336 = vmatprep.subr.mxu0 0.0
      %337 = vmatpush1.msra.mxu0 0.0
      %338 = vmatprep.subr.mxu0 0.0
      %339 = vmatpush1.msra.mxu0 0.0
      %340 = vmatprep.subr.mxu0 0.0
      %341 = vmatpush1.msra.mxu0 0.0
      %342 = vmatprep.subr.mxu0 0.0
      %343 = vmatpush1.msra.mxu0 0.0
      %344 = vmatprep.subr.mxu0 0.0
      %345 = vmatpush1.msra.mxu0 0.0
      %346 = vmatprep.subr.mxu0 0.0
      %347 = vmatpush1.msra.mxu0 0.0
      %348 = vmatprep.subr.mxu0 0.0
      %349 = vmatpush1.msra.mxu0 0.0
      %350 = vmatprep.subr.mxu0 0.0
      %351 = vmatpush1.msra.mxu0 0.0
      %352 = vmatprep.subr.mxu0 0.0
      %353 = vmatpush1.msra.mxu0 0.0
      %354 = vmatprep.subr.mxu0 0.0
      %355 = vmatpush1.msra.mxu0 0.0
      %356 = vmatprep.subr.mxu0 0.0
      %357 = vmatpush1.msra.mxu0 0.0
      %358 = vmatprep.subr.mxu0 0.0
      %359 = vmatpush1.msra.mxu0 0.0
      %360 = vmatprep.subr.mxu0 0.0
      %361 = vmatpush1.msra.mxu0 0.0
      %362 = vmatprep.subr.mxu0 0.0
      %363 = vmatpush1.msra.mxu0 0.0
      %364 = vmatprep.subr.mxu0 0.0
      %365 = vmatpush1.msra.mxu0 0.0
      %366 = vmatprep.subr.mxu0 0.0
      %367 = vmatpush1.msra.mxu0 0.0
      %368 = vmatprep.subr.mxu0 0.0
      %369 = vmatpush1.msra.mxu0 0.0
      %370 = vmatprep.subr.mxu0 0.0
      %371 = vmatpush1.msra.mxu0 0.0
      %372 = vmatprep.subr.mxu0 0.0
      %373 = vmatpush1.msra.mxu0 0.0
      %374 = vmatprep.subr.mxu0 0.0
      %375 = vmatpush1.msra.mxu0 0.0
      %376 = vmatprep.subr.mxu0 0.0
      %377 = vmatpush1.msra.mxu0 0.0
      %378 = vmatprep.subr.mxu0 0.0
      %379 = vmatpush1.msra.mxu0 0.0
      %380 = vmatprep.subr.mxu0 0.0
      %381 = vmatpush1.msra.mxu0 0.0
      %382 = vmatprep.subr.mxu0 0.0
      %383 = vmatpush1.msra.mxu0 0.0
      %384 = vmatprep.mubr.f32.mxu0 0.0
      %385 = vmatmul.mubr.f32.gmra.mrb[0].mxu0 %v315
      %v386 = vpop.f32.mrb[0].mxu0
      %v387 = vadd.f32 0.0, %v386
      %v388 = vpop.f32.mrb[0].mxu0
      %389 = vmatprep.mubr.f32.mxu0 0.0
      %390 = vmatmul.mubr.f32.gmra.mrb[0].mxu0 %v318
      %v391 = vpop.f32.mrb[0].mxu0
      %v392 = vadd.f32 0.0, %v391
      %v393 = vpop.f32.mrb[0].mxu0
      %394 = vdwg.mxu0
      %v396 = vsel %vm290, %v293, 0
      %v399 = vsel %vm290, %v294, 0
      %401 = vmatprep.subr.mxu0 0.0
      %402 = vmatpush1.msra.mxu0 %v295
      %403 = vmatprep.subr.mxu0 0.0
      %404 = vmatpush1.msra.mxu0 %v296
      %405 = vmatprep.subr.mxu0 0.0
      %406 = vmatpush1.msra.mxu0 %v297
      %407 = vmatprep.subr.mxu0 0.0
      %408 = vmatpush1.msra.mxu0 %v298
      %409 = vmatprep.subr.mxu0 0.0
      %410 = vmatpush1.msra.mxu0 %v299
      %411 = vmatprep.subr.mxu0 0.0
      %412 = vmatpush1.msra.mxu0 %v300
      %413 = vmatprep.subr.mxu0 0.0
      %414 = vmatpush1.msra.mxu0 %v301
      %415 = vmatprep.subr.mxu0 0.0
      %416 = vmatpush1.msra.mxu0 %v302
      %417 = vmatprep.subr.mxu0 0.0
      %418 = vmatpush1.msra.mxu0 0.0
      %419 = vmatprep.subr.mxu0 0.0
      %420 = vmatpush1.msra.mxu0 0.0
      %421 = vmatprep.subr.mxu0 0.0
      %422 = vmatpush1.msra.mxu0 0.0
      %423 = vmatprep.subr.mxu0 0.0
      %424 = vmatpush1.msra.mxu0 0.0
      %425 = vmatprep.subr.mxu0 0.0
      %426 = vmatpush1.msra.mxu0 0.0
      %427 = vmatprep.subr.mxu0 0.0
      %428 = vmatpush1.msra.mxu0 0.0
      %429 = vmatprep.subr.mxu0 0.0
      %430 = vmatpush1.msra.mxu0 0.0
      %431 = vmatprep.subr.mxu0 0.0
      %432 = vmatpush1.msra.mxu0 0.0
      %433 = vmatprep.subr.mxu0 0.0
      %434 = vmatpush1.msra.mxu0 0.0
      %435 = vmatprep.subr.mxu0 0.0
      %436 = vmatpush1.msra.mxu0 0.0
      %437 = vmatprep.subr.mxu0 0.0
      %438 = vmatpush1.msra.mxu0 0.0
      %439 = vmatprep.subr.mxu0 0.0
      %440 = vmatpush1.msra.mxu0 0.0
      %441 = vmatprep.subr.mxu0 0.0
      %442 = vmatpush1.msra.mxu0 0.0
      %443 = vmatprep.subr.mxu0 0.0
      %444 = vmatpush1.msra.mxu0 0.0
      %445 = vmatprep.subr.mxu0 0.0
      %446 = vmatpush1.msra.mxu0 0.0
      %447 = vmatprep.subr.mxu0 0.0
      %448 = vmatpush1.msra.mxu0 0.0
      %449 = vmatprep.subr.mxu0 0.0
      %450 = vmatpush1.msra.mxu0 0.0
      %451 = vmatprep.subr.mxu0 0.0
      %452 = vmatpush1.msra.mxu0 0.0
      %453 = vmatprep.subr.mxu0 0.0
      %454 = vmatpush1.msra.mxu0 0.0
      %455 = vmatprep.subr.mxu0 0.0
      %456 = vmatpush1.msra.mxu0 0.0
      %457 = vmatprep.subr.mxu0 0.0
      %458 = vmatpush1.msra.mxu0 0.0
      %459 = vmatprep.subr.mxu0 0.0
      %460 = vmatpush1.msra.mxu0 0.0
      %461 = vmatprep.subr.mxu0 0.0
      %462 = vmatpush1.msra.mxu0 0.0
      %463 = vmatprep.subr.mxu0 0.0
      %464 = vmatpush1.msra.mxu0 0.0
      %465 = vmatprep.mubr.f32.mxu0 0.0
      %466 = vmatmul.mubr.f32.gmra.mrb[0].mxu0 %v396
      %v467 = vpop.f32.mrb[0].mxu0
      %v468 = vadd.f32 %v387, %v467
      %v469 = vpop.f32.mrb[0].mxu0
      %470 = vmatprep.mubr.f32.mxu0 0.0
      %471 = vmatmul.mubr.f32.gmra.mrb[0].mxu0 %v399
      %v472 = vpop.f32.mrb[0].mxu0
      %v473 = vadd.f32 %v392, %v472
      %v474 = vpop.f32.mrb[0].mxu0
      %475 = vdwg.mxu0
      %v476 = vld [vmem:[#allocation2 + $0x2] sm:$0xff]
      %v477 = vld [vmem:[#allocation2 + $0xa] sm:$0xff]
      %s478 = scalar_lea.vmem %s1, 128
      %v479 = vld [vmem:[%s478] sm:$0xff]
      %v480 = vld [vmem:[%s478 + $0x8] sm:$0xff]
      %v481 = vld [vmem:[%s478 + $0x10] sm:$0xff]
      %v482 = vld [vmem:[%s478 + $0x18] sm:$0xff]
      %v483 = vld [vmem:[%s478 + $0x20] sm:$0xff]
      %v484 = vld [vmem:[%s478 + $0x28] sm:$0xff]
      %v485 = vld [vmem:[%s478 + $0x30] sm:$0xff]
      %v486 = vld [vmem:[%s478 + $0x38] sm:$0xff]
      %v488 = vsel %vm290, %v476, 0
      %v491 = vsel %vm290, %v477, 0
      %493 = vmatprep.subr.mxu0 0.0
      %494 = vmatpush1.msra.mxu0 %v479
      %495 = vmatprep.subr.mxu0 0.0
      %496 = vmatpush1.msra.mxu0 %v480
      %497 = vmatprep.subr.mxu0 0.0
      %498 = vmatpush1.msra.mxu0 %v481
      %499 = vmatprep.subr.mxu0 0.0
      %500 = vmatpush1.msra.mxu0 %v482
      %501 = vmatprep.subr.mxu0 0.0
      %502 = vmatpush1.msra.mxu0 %v483
      %503 = vmatprep.subr.mxu0 0.0
      %504 = vmatpush1.msra.mxu0 %v484
      %505 = vmatprep.subr.mxu0 0.0
      %506 = vmatpush1.msra.mxu0 %v485
      %507 = vmatprep.subr.mxu0 0.0
      %508 = vmatpush1.msra.mxu0 %v486
      %509 = vmatprep.subr.mxu0 0.0
      %510 = vmatpush1.msra.mxu0 0.0
      %511 = vmatprep.subr.mxu0 0.0
      %512 = vmatpush1.msra.mxu0 0.0
      %513 = vmatprep.subr.mxu0 0.0
      %514 = vmatpush1.msra.mxu0 0.0
      %515 = vmatprep.subr.mxu0 0.0
      %516 = vmatpush1.msra.mxu0 0.0
      %517 = vmatprep.subr.mxu0 0.0
      %518 = vmatpush1.msra.mxu0 0.0
      %519 = vmatprep.subr.mxu0 0.0
      %520 = vmatpush1.msra.mxu0 0.0
      %521 = vmatprep.subr.mxu0 0.0
      %522 = vmatpush1.msra.mxu0 0.0
      %523 = vmatprep.subr.mxu0 0.0
      %524 = vmatpush1.msra.mxu0 0.0
      %525 = vmatprep.subr.mxu0 0.0
      %526 = vmatpush1.msra.mxu0 0.0
      %527 = vmatprep.subr.mxu0 0.0
      %528 = vmatpush1.msra.mxu0 0.0
      %529 = vmatprep.subr.mxu0 0.0
      %530 = vmatpush1.msra.mxu0 0.0
      %531 = vmatprep.subr.mxu0 0.0
      %532 = vmatpush1.msra.mxu0 0.0
      %533 = vmatprep.subr.mxu0 0.0
      %534 = vmatpush1.msra.mxu0 0.0
      %535 = vmatprep.subr.mxu0 0.0
      %536 = vmatpush1.msra.mxu0 0.0
      %537 = vmatprep.subr.mxu0 0.0
      %538 = vmatpush1.msra.mxu0 0.0
      %539 = vmatprep.subr.mxu0 0.0
      %540 = vmatpush1.msra.mxu0 0.0
      %541 = vmatprep.subr.mxu0 0.0
      %542 = vmatpush1.msra.mxu0 0.0
      %543 = vmatprep.subr.mxu0 0.0
      %544 = vmatpush1.msra.mxu0 0.0
      %545 = vmatprep.subr.mxu0 0.0
      %546 = vmatpush1.msra.mxu0 0.0
      %547 = vmatprep.subr.mxu0 0.0
      %548 = vmatpush1.msra.mxu0 0.0
      %549 = vmatprep.subr.mxu0 0.0
      %550 = vmatpush1.msra.mxu0 0.0
      %551 = vmatprep.subr.mxu0 0.0
      %552 = vmatpush1.msra.mxu0 0.0
      %553 = vmatprep.subr.mxu0 0.0
      %554 = vmatpush1.msra.mxu0 0.0
      %555 = vmatprep.subr.mxu0 0.0
      %556 = vmatpush1.msra.mxu0 0.0
      %557 = vmatprep.mubr.f32.mxu0 0.0
      %558 = vmatmul.mubr.f32.gmra.mrb[0].mxu0 %v488
      %v559 = vpop.f32.mrb[0].mxu0
      %v560 = vadd.f32 0.0, %v559
      %v561 = vpop.f32.mrb[0].mxu0
      %562 = vmatprep.mubr.f32.mxu0 0.0
      %563 = vmatmul.mubr.f32.gmra.mrb[0].mxu0 %v491
      %v564 = vpop.f32.mrb[0].mxu0
      %v565 = vadd.f32 0.0, %v564
      %v566 = vpop.f32.mrb[0].mxu0
      %567 = vdwg.mxu0
      %v568 = vadd.f32 %v468, %v560
      %v569 = vadd.f32 %v473, %v565
      %v570 = vadd.f32 %v568, %v569
      %v571 = vrot.slane %v570, 4
      %v572 = vadd.f32 %v570, %v571
      %v573 = vrot.slane %v572, 2
      %v574 = vadd.f32 %v572, %v573
      %v575 = vrot.slane %v574, 1
      %v576 = vadd.f32 %v574, %v575
      %577 = vst [vmem:[%s275] sm:$0x1] %v576
      %v578 = vmul.f32 %v568, %v568
      %v579 = vmul.f32 %v569, %v569
      %v580 = vadd.f32 %v578, %v579
      %v581 = vrot.slane %v580, 4
      %v582 = vadd.f32 %v580, %v581
      %v583 = vrot.slane %v582, 2
      %v584 = vadd.f32 %v582, %v583
      %v585 = vrot.slane %v584, 1
      %v586 = vadd.f32 %v584, %v585
      %587 = vst [vmem:[%s275 + $0x1] sm:$0x1] %v586
      %588 = vst [vmem:[%s271] sm:$0xff] %v568
      %589 = vst [vmem:[%s271 + $0x8] sm:$0xff] %v569
      %v590 = vld [vmem:[%s2] sm:$0xff]
      %v591 = vld [vmem:[%s2 + $0x8] sm:$0xff]
      %v592 = vld [vmem:[%s2 + $0x10] sm:$0xff]
      %v593 = vld [vmem:[%s2 + $0x18] sm:$0xff]
      %v594 = vld [vmem:[%s2 + $0x20] sm:$0xff]
      %v595 = vld [vmem:[%s2 + $0x28] sm:$0xff]
      %v596 = vld [vmem:[%s2 + $0x30] sm:$0xff]
      %v597 = vld [vmem:[%s2 + $0x38] sm:$0xff]
      %v599 = vsel %vm290, %v285, 0
      %v602 = vsel %vm290, %v286, 0
      %604 = vmatprep.subr.mxu0 0.0
      %605 = vmatpush1.msra.mxu0 %v590
      %606 = vmatprep.subr.mxu0 0.0
      %607 = vmatpush1.msra.mxu0 %v591
      %608 = vmatprep.subr.mxu0 0.0
      %609 = vmatpush1.msra.mxu0 %v592
      %610 = vmatprep.subr.mxu0 0.0
      %611 = vmatpush1.msra.mxu0 %v593
      %612 = vmatprep.subr.mxu0 0.0
      %613 = vmatpush1.msra.mxu0 %v594
      %614 = vmatprep.subr.mxu0 0.0
      %615 = vmatpush1.msra.mxu0 %v595
      %616 = vmatprep.subr.mxu0 0.0
      %617 = vmatpush1.msra.mxu0 %v596
      %618 = vmatprep.subr.mxu0 0.0
      %619 = vmatpush1.msra.mxu0 %v597
      %620 = vmatprep.subr.mxu0 0.0
      %621 = vmatpush1.msra.mxu0 0.0
      %622 = vmatprep.subr.mxu0 0.0
      %623 = vmatpush1.msra.mxu0 0.0
      %624 = vmatprep.subr.mxu0 0.0
      %625 = vmatpush1.msra.mxu0 0.0
      %626 = vmatprep.subr.mxu0 0.0
      %627 = vmatpush1.msra.mxu0 0.0
      %628 = vmatprep.subr.mxu0 0.0
      %629 = vmatpush1.msra.mxu0 0.0
      %630 = vmatprep.subr.mxu0 0.0
      %631 = vmatpush1.msra.mxu0 0.0
      %632 = vmatprep.subr.mxu0 0.0
      %633 = vmatpush1.msra.mxu0 0.0
      %634 = vmatprep.subr.mxu0 0.0
      %635 = vmatpush1.msra.mxu0 0.0
      %636 = vmatprep.subr.mxu0 0.0
      %637 = vmatpush1.msra.mxu0 0.0
      %638 = vmatprep.subr.mxu0 0.0
      %639 = vmatpush1.msra.mxu0 0.0
      %640 = vmatprep.subr.mxu0 0.0
      %641 = vmatpush1.msra.mxu0 0.0
      %642 = vmatprep.subr.mxu0 0.0
      %643 = vmatpush1.msra.mxu0 0.0
      %644 = vmatprep.subr.mxu0 0.0
      %645 = vmatpush1.msra.mxu0 0.0
      %646 = vmatprep.subr.mxu0 0.0
      %647 = vmatpush1.msra.mxu0 0.0
      %648 = vmatprep.subr.mxu0 0.0
      %649 = vmatpush1.msra.mxu0 0.0
      %650 = vmatprep.subr.mxu0 0.0
      %651 = vmatpush1.msra.mxu0 0.0
      %652 = vmatprep.subr.mxu0 0.0
      %653 = vmatpush1.msra.mxu0 0.0
      %654 = vmatprep.subr.mxu0 0.0
      %655 = vmatpush1.msra.mxu0 0.0
      %656 = vmatprep.subr.mxu0 0.0
      %657 = vmatpush1.msra.mxu0 0.0
      %658 = vmatprep.subr.mxu0 0.0
      %659 = vmatpush1.msra.mxu0 0.0
      %660 = vmatprep.subr.mxu0 0.0
      %661 = vmatpush1.msra.mxu0 0.0
      %662 = vmatprep.subr.mxu0 0.0
      %663 = vmatpush1.msra.mxu0 0.0
      %664 = vmatprep.subr.mxu0 0.0
      %665 = vmatpush1.msra.mxu0 0.0
      %666 = vmatprep.subr.mxu0 0.0
      %667 = vmatpush1.msra.mxu0 0.0
      %668 = vmatprep.mubr.f32.mxu0 0.0
      %669 = vmatmul.mubr.f32.gmra.mrb[0].mxu0 %v599
      %v670 = vpop.f32.mrb[0].mxu0
      %v671 = vadd.f32 0.0, %v670
      %v672 = vpop.f32.mrb[0].mxu0
      %673 = vmatprep.mubr.f32.mxu0 0.0
      %674 = vmatmul.mubr.f32.gmra.mrb[0].mxu0 %v602
      %v675 = vpop.f32.mrb[0].mxu0
      %v676 = vadd.f32 0.0, %v675
      %v677 = vpop.f32.mrb[0].mxu0
      %678 = vdwg.mxu0
      %v679 = vadd.f32 %v671, %v676
      %v680 = vrot.slane %v679, 4
      %v681 = vadd.f32 %v679, %v680
      %v682 = vrot.slane %v681, 2
      %v683 = vadd.f32 %v681, %v682
      %v684 = vrot.slane %v683, 1
      %v685 = vadd.f32 %v683, %v684
      %686 = vst [vmem:[%s284] sm:$0x1] %v685
      %v687 = vmul.f32 %v671, %v671
      %v688 = vmul.f32 %v676, %v676
      %v689 = vadd.f32 %v687, %v688
      %v690 = vrot.slane %v689, 4
      %v691 = vadd.f32 %v689, %v690
      %v692 = vrot.slane %v691, 2
      %v693 = vadd.f32 %v691, %v692
      %v694 = vrot.slane %v693, 1
      %v695 = vadd.f32 %v693, %v694
      %696 = vst [vmem:[%s284 + $0x1] sm:$0x1] %v695
      %697 = vst [vmem:[%s280] sm:$0xff] %v671
      %698 = vst [vmem:[%s280 + $0x8] sm:$0xff] %v676
      %p699 = scmp.lt.s32.totalorder %s18, 1
      %s700 = scalar_select %p699, %s18, 1
      %s701 = smul.addr %s700, 2
      %s702 = smul.addr %s701, 8
      %s703 = scalar_lea.vmem %s3, %s702
      %p704 = scmp.lt.s32.totalorder %s18, 1
      %s705 = scalar_select %p704, %s18, 1
      %s706 = smul.addr %s705, 2
      %s707 = scalar_lea.vmem %s4, %s706
      %p708 = scmp.lt.s32.totalorder %s18, 1
      %s709 = scalar_select %p708, %s18, 1
      %s710 = smul.addr %s709, 2
      %s711 = smul.addr %s710, 8
      %s712 = scalar_lea.vmem %s5, %s711
      %p713 = scmp.lt.s32.totalorder %s18, 1
      %s714 = scalar_select %p713, %s18, 1
      %s715 = smul.addr %s714, 2
      %s716 = scalar_lea.vmem %s6, %s715
      // Predicated region
      $region33: #{residual_block.3} parent=31 // pred_check
        %p717 = pneg %p104
      $region34: #{residual_block.3} parent=31 // pred_check_branch
        %719 = sbr.rel (%p717) target = $region36
      $region35: #{residual_block.3} parent=31 // pred_region
        _
      $region36: #{residual_block.3} parent=31 // pred_fallthru
        _
      // Predicated region
      $region37: #{residual_block.3} parent=31 // pred_check
        %p720 = pneg %p130
      $region38: #{residual_block.3} parent=31 // pred_check_branch
        %722 = sbr.rel (%p720) target = $region40
      $region39: #{residual_block.3} parent=31 // pred_region
        _
      $region40: #{residual_block.3} parent=31 // pred_fallthru
        _
      // Predicated region
      $region41: #{residual_block.3} parent=31 // pred_check
        %p723 = pneg %p156
      $region42: #{residual_block.3} parent=31 // pred_check_branch
        %725 = sbr.rel (%p723) target = $region44
      $region43: #{residual_block.3} parent=31 // pred_region
        _
      $region44: #{residual_block.3} parent=31 // pred_fallthru
        _
      // Predicated region
      $region45: #{residual_block.3} parent=31 // pred_check
        %p726 = pneg %p182
      $region46: #{residual_block.3} parent=31 // pred_check_branch
        %728 = sbr.rel (%p726) target = $region48
      $region47: #{residual_block.3} parent=31 // pred_region
        _
      $region48: #{residual_block.3} parent=31 // pred_fallthru
        _
    $region32: #{residual_block.3} parent=5 // pred_fallthru
      _
    %p729 = scmp.le.s32.totalorder 2, %s13
    // Predicated region
    $region49: #{residual_block.3} parent=5 // pred_check
      %p730 = pneg %p729
    $region50: #{residual_block.3} parent=5 // pred_check_branch
      %732 = sbr.rel (%p730) target = $region52
    $region51: #{residual_block.3} parent=5 // pred_region
      %s733 = ssub.s32 %s13, 2
      // Predicated region
      $region53: #{residual_block.3} parent=51 // pred_check
        %p734 = pneg %p110
      $region54: #{residual_block.3} parent=51 // pred_check_branch
        %736 = sbr.rel (%p734) target = $region56
      $region55: #{residual_block.3} parent=51 // pred_region
        %p737 = scmp.lt.s32.totalorder %s19, 1
        %s738 = scalar_select %p737, %s19, 1
        %s739 = smul.addr %s738, 2
        %s740 = smul.addr %s739, 8
        %s741 = scalar_lea.vmem %s3, %s740
      $region56: #{residual_block.3} parent=51 // pred_fallthru
        _
      // Predicated region
      $region57: #{residual_block.3} parent=51 // pred_check
        %p742 = pneg %p136
      $region58: #{residual_block.3} parent=51 // pred_check_branch
        %744 = sbr.rel (%p742) target = $region60
      $region59: #{residual_block.3} parent=51 // pred_region
        %p745 = scmp.lt.s32.totalorder %s19, 1
        %s746 = scalar_select %p745, %s19, 1
        %s747 = smul.addr %s746, 2
        %s748 = scalar_lea.vmem %s4, %s747
      $region60: #{residual_block.3} parent=51 // pred_fallthru
        _
      // Predicated region
      $region61: #{residual_block.3} parent=51 // pred_check
        %p749 = pneg %p162
      $region62: #{residual_block.3} parent=51 // pred_check_branch
        %751 = sbr.rel (%p749) target = $region64
      $region63: #{residual_block.3} parent=51 // pred_region
        %p752 = scmp.lt.s32.totalorder %s19, 1
        %s753 = scalar_select %p752, %s19, 1
        %s754 = smul.addr %s753, 2
        %s755 = smul.addr %s754, 8
        %s756 = scalar_lea.vmem %s5, %s755
      $region64: #{residual_block.3} parent=51 // pred_fallthru
        _
      // Predicated region
      $region65: #{residual_block.3} parent=51 // pred_check
        %p757 = pneg %p188
      $region66: #{residual_block.3} parent=51 // pred_check_branch
        %759 = sbr.rel (%p757) target = $region68
      $region67: #{residual_block.3} parent=51 // pred_region
        %p760 = scmp.lt.s32.totalorder %s19, 1
        %s761 = scalar_select %p760, %s19, 1
        %s762 = smul.addr %s761, 2
        %s763 = scalar_lea.vmem %s6, %s762
      $region68: #{residual_block.3} parent=51 // pred_fallthru
        _
    $region52: #{residual_block.3} parent=5 // pred_fallthru
      _
  $region6: #{residual_block.3} parent=0 // loop_footer
    %s17 = sadd.s32 1, %s13
  $region7: #{residual_block.3} parent=0 // loop_footer_branch
    %12 = sbr.rel target = $region3
  $region8: #{residual_block.3} parent=0 // loop_exit
    _

// kernel: residual_block.4
$region0: #{residual_block.4}
  #allocation0 [shape = 'u32[]', space=smem, size = 0x4, offset = 0x4, fixed_abs, tag = 'smem constant byte address 0x4 - core index']
  #allocation1 [shape = 'u32[144,128]{1,0:T(1,128)}', space=vmem, size = 0x12000, scoped, tag = 'internal scratch']
  #allocation2 [shape = 'f32[18,128]{1,0:T(8,128)}', space=vmem, size = 0x3000, scoped, tag = 'scratch operand']
  %s0 = inlined_call_operand.vmem [shape: f32[2,16,128], index: 0, kind: input, shape index: {}]
  %s1 = inlined_call_operand.vmem [shape: f32[3,128,128], index: 1, kind: input, shape index: {}]
  %s2 = inlined_call_operand.vmem [shape: f32[1,128], index: 2, kind: input, shape index: {}]
  %s3 = inlined_call_operand.vmem [shape: f32[1,128], index: 3, kind: input, shape index: {}]
  %s4 = inlined_call_operand.vmem [shape: f32[2,16,128], index: 4, kind: output, shape index: {0}]
  %s5 = inlined_call_operand.vmem [shape: f32[2,2,128], index: 5, kind: output, shape index: {1}]
  %6 = xla_tuple %s4, %s5
  %s7 = sld [smem:[#allocation0]]
  $region57: #{residual_block.4} parent=0
    _
  %s9 = ssub.s32 1, %s7
  %s10 = scalar_select 0, %s9, %s7
  loop: start=0, step=1, limit=4
  $region2: #{residual_block.4} parent=0 // loop_pre_header
    _
  $region3: #{residual_block.4} parent=0 // loop_header
    %s12 = sphi 0, %s16
    %p13 = scmp.ge.s32.totalorder %s12, 4
    %s22 = sphi 0, %s24
    %s25 = sphi 0, %s22
    %s26 = sphi 0, %s25
    %s42 = sphi 0, %s26
    %s46 = sphi 0, %s46
    %s48 = sphi 0, %s46
    %s49 = sphi 0, %s48
    %s63 = sphi 0, %s49
    %s67 = sphi 0, %s67
    %s69 = sphi 0, %s67
    %s70 = sphi 0, %s69
    %s84 = sphi 0, %s70
    %s88 = sphi 0, %s88
    %s90 = sphi 0, %s88
    %s91 = sphi 0, %s90
    %s105 = sphi 0, %s91
    %s111 = sphi 0, %s113
    %s114 = sphi 0, %s111
    %s115 = sphi 0, %s114
    %s131 = sphi 0, %s115
    %s137 = sphi 0, %s139
    %s140 = sphi 0, %s137
    %s141 = sphi 0, %s140
    %s157 = sphi 0, %s141
  $region4: #{residual_block.4} parent=0 // loop_header_branch
    %15 = sbr.rel (%p13) target = $region8
  $region5: #{residual_block.4} parent=0 // loop_body
    %s17 = ssub.s32 %s12, 1
    %s18 = ssub.s32 %s12, 2
    %s19 = sadd.s32 %s12, 1
    %s20 = ssub.s32 %s12, %s19
    %p21 = scmp.eq.s32.totalorder %s20, 0
    %s23 = sadd.s32 %s22, 1
    %s24 = scalar_select %p21, %s22, %s23
    %p27 = pneg %p21
    %p28 = scmp.eq.s32.totalorder %s12, 1
    %p29 = por %p27, %p28
    %p30 = scmp.ne.s32.totalorder %s22, %s25
    %p31 = scmp.eq.s32.totalorder %s12, 0
    %p32 = por %p30, %p31
    %p33 = scmp.ne.s32.totalorder %s22, %s25
    %p34 = scmp.eq.s32.totalorder %s17, 1
    %p35 = por %p33, %p34
    %p36 = scmp.ne.s32.totalorder %s25, %s26
    %p37 = scmp.eq.s32.totalorder %s17, 0
    %p38 = por %p36, %p37
    %p39 = scmp.ne.s32.totalorder %s25, %s26
    %p40 = scmp.eq.s32.totalorder %s18, 1
    %p41 = por %p39, %p40
    %p43 = scmp.ne.s32.totalorder %s26, %s42
    %p44 = scmp.eq.s32.totalorder %s18, 0
    %p45 = por %p43, %p44
    %s47 = sadd.s32 %s46, 1
    %p50 = scmp.eq.s32.totalorder %s12, 1
    %p51 = scmp.ne.s32.totalorder %s46, %s48
    %p52 = scmp.eq.s32.totalorder %s12, 0
    %p53 = por %p51, %p52
    %p54 = scmp.ne.s32.totalorder %s46, %s48
    %p55 = scmp.eq.s32.totalorder %s17, 1
    %p56 = por %p54, %p55
    %p57 = scmp.ne.s32.totalorder %s48, %s49
    %p58 = scmp.eq.s32.totalorder %s17, 0
    %p59 = por %p57, %p58
    %p60 = scmp.ne.s32.totalorder %s48, %s49
    %p61 = scmp.eq.s32.totalorder %s18, 1
    %p62 = por %p60, %p61
    %p64 = scmp.ne.s32.totalorder %s49, %s63
    %p65 = scmp.eq.s32.totalorder %s18, 0
    %p66 = por %p64, %p65
    %s68 = sadd.s32 %s67, 1
    %p71 = scmp.eq.s32.totalorder %s12, 1
    %p72 = scmp.ne.s32.totalorder %s67, %s69
    %p73 = scmp.eq.s32.totalorder %s12, 0
    %p74 = por %p72, %p73
    %p75 = scmp.ne.s32.totalorder %s67, %s69
    %p76 = scmp.eq.s32.totalorder %s17, 1
    %p77 = por %p75, %p76
    %p78 = scmp.ne.s32.totalorder %s69, %s70
    %p79 = scmp.eq.s32.totalorder %s17, 0
    %p80 = por %p78, %p79
    %p81 = scmp.ne.s32.totalorder %s69, %s70
    %p82 = scmp.eq.s32.totalorder %s18, 1
    %p83 = por %p81, %p82
    %p85 = scmp.ne.s32.totalorder %s70, %s84
    %p86 = scmp.eq.s32.totalorder %s18, 0
    %p87 = por %p85, %p86
    %s89 = sadd.s32 %s88, 1
    %p92 = scmp.eq.s32.totalorder %s12, 1
    %p93 = scmp.ne.s32.totalorder %s88, %s90
    %p94 = scmp.eq.s32.totalorder %s12, 0
    %p95 = por %p93, %p94
    %p96 = scmp.ne.s32.totalorder %s88, %s90
    %p97 = scmp.eq.s32.totalorder %s17, 1
    %p98 = por %p96, %p97
    %p99 = scmp.ne.s32.totalorder %s90, %s91
    %p100 = scmp.eq.s32.totalorder %s17, 0
    %p101 = por %p99, %p100
    %p102 = scmp.ne.s32.totalorder %s90, %s91
    %p103 = scmp.eq.s32.totalorder %s18, 1
    %p104 = por %p102, %p103
    %p106 = scmp.ne.s32.totalorder %s91, %s105
    %p107 = scmp.eq.s32.totalorder %s18, 0
    %p108 = por %p106, %p107
    %s109 = ssub.s32 %s12, %s19
    %p110 = scmp.eq.s32.totalorder %s109, 0
    %s112 = sadd.s32 %s111, 1
    %s113 = scalar_select %p110, %s111, %s112
    %p116 = pneg %p110
    %p117 = scmp.eq.s32.totalorder %s12, 1
    %p118 = por %p116, %p117
    %p119 = scmp.ne.s32.totalorder %s111, %s114
    %p120 = scmp.eq.s32.totalorder %s12, 0
    %p121 = por %p119, %p120
    %p122 = scmp.ne.s32.totalorder %s111, %s114
    %p123 = scmp.eq.s32.totalorder %s17, 1
    %p124 = por %p122, %p123
    %p125 = scmp.ne.s32.totalorder %s114, %s115
    %p126 = scmp.eq.s32.totalorder %s17, 0
    %p127 = por %p125, %p126
    %p128 = scmp.ne.s32.totalorder %s114, %s115
    %p129 = scmp.eq.s32.totalorder %s18, 1
    %p130 = por %p128, %p129
    %p132 = scmp.ne.s32.totalorder %s115, %s131
    %p133 = scmp.eq.s32.totalorder %s18, 0
    %p134 = por %p132, %p133
    %s135 = ssub.s32 %s12, %s19
    %p136 = scmp.eq.s32.totalorder %s135, 0
    %s138 = sadd.s32 %s137, 1
    %s139 = scalar_select %p136, %s137, %s138
    %p142 = pneg %p136
    %p143 = scmp.eq.s32.totalorder %s12, 1
    %p144 = por %p142, %p143
    %p145 = scmp.ne.s32.totalorder %s137, %s140
    %p146 = scmp.eq.s32.totalorder %s12, 0
    %p147 = por %p145, %p146
    %p148 = scmp.ne.s32.totalorder %s137, %s140
    %p149 = scmp.eq.s32.totalorder %s17, 1
    %p150 = por %p148, %p149
    %p151 = scmp.ne.s32.totalorder %s140, %s141
    %p152 = scmp.eq.s32.totalorder %s17, 0
    %p153 = por %p151, %p152
    %p154 = scmp.ne.s32.totalorder %s140, %s141
    %p155 = scmp.eq.s32.totalorder %s18, 1
    %p156 = por %p154, %p155
    %p158 = scmp.ne.s32.totalorder %s141, %s157
    %p159 = scmp.eq.s32.totalorder %s18, 0
    %p160 = por %p158, %p159
    %p161 = scmp.le.s32.totalorder 1, %s12
    %p162 = scmp.lt.s32.totalorder %s12, 3
    %p163 = pnand %p161, %p162
    %p164 = pneg %p163
    // Predicated region
    $region9: #{residual_block.4} parent=5 // pred_check
      _
    $region10: #{residual_block.4} parent=5 // pred_check_branch
      %166 = sbr.rel (%p163) target = $region12
    $region11: #{residual_block.4} parent=5 // pred_region
      %s167 = ssub.s32 %s12, 1
      // Predicated region
      $region13: #{residual_block.4} parent=11 // pred_check
        %p168 = pneg %p59
      $region14: #{residual_block.4} parent=11 // pred_check_branch
        %170 = sbr.rel (%p168) target = $region16
      $region15: #{residual_block.4} parent=11 // pred_region
        _
      $region16: #{residual_block.4} parent=11 // pred_fallthru
        _
      // Predicated region
      $region17: #{residual_block.4} parent=11 // pred_check
        %p171 = pneg %p80
      $region18: #{residual_block.4} parent=11 // pred_check_branch
        %173 = sbr.rel (%p171) target = $region20
      $region19: #{residual_block.4} parent=11 // pred_region
        _
      $region20: #{residual_block.4} parent=11 // pred_fallthru
        _
      // Predicated region
      $region21: #{residual_block.4} parent=11 // pred_check
        %p174 = pneg %p101
      $region22: #{residual_block.4} parent=11 // pred_check_branch
        %176 = sbr.rel (%p174) target = $region24
      $region23: #{residual_block.4} parent=11 // pred_region
        _
      $region24: #{residual_block.4} parent=11 // pred_fallthru
        _
    $region12: #{residual_block.4} parent=5 // pred_fallthru
      _
    %p177 = scmp.lt.s32.totalorder %s12, 2
    // Predicated region
    $region25: #{residual_block.4} parent=5 // pred_check
      %p178 = pneg %p177
    $region26: #{residual_block.4} parent=5 // pred_check_branch
      %180 = sbr.rel (%p178) target = $region28
    $region27: #{residual_block.4} parent=5 // pred_region
      // Predicated region
      $region29: #{residual_block.4} parent=27 // pred_check
        %p181 = pneg %p32
      $region30: #{residual_block.4} parent=27 // pred_check_branch
        %183 = sbr.rel (%p181) target = $region32
      $region31: #{residual_block.4} parent=27 // pred_region
        %p184 = scmp.lt.s32.totalorder %s12, 1
        %s185 = scalar_select %p184, %s12, 1
        %s186 = smul.addr %s185, 2
        %s187 = smul.addr %s186, 8
        %s188 = scalar_lea.vmem %s0, %s187
      $region32: #{residual_block.4} parent=27 // pred_fallthru
        _
    $region28: #{residual_block.4} parent=5 // pred_fallthru
      _
    %p189 = scmp.le.s32.totalorder 1, %s12
    %p190 = scmp.lt.s32.totalorder %s12, 3
    %p191 = pnand %p189, %p190
    %p192 = pneg %p191
    // Predicated region
    $region33: #{residual_block.4} parent=5 // pred_check
      _
    $region34: #{residual_block.4} parent=5 // pred_check_branch
      %194 = sbr.rel (%p191) target = $region36
    $region35: #{residual_block.4} parent=5 // pred_region
      %s195 = ssub.s32 %s12, 1
      %p196 = scmp.lt.s32.totalorder %s17, 1
      %s197 = scalar_select %p196, %s17, 1
      %s198 = smul.addr %s197, 2
      %s199 = smul.addr %s198, 8
      %s200 = scalar_lea.vmem %s0, %s199
      %p201 = pneg %p38
      %p202 = pneg %p35
      %p203 = pneg %p59
      %p204 = pneg %p56
      %p205 = pneg %p80
      %p206 = pneg %p77
      %p207 = pneg %p101
      %p208 = pneg %p98
      %p209 = pneg %p127
      %p210 = pneg %p124
      %p211 = scmp.lt.s32.totalorder %s17, 1
      %s212 = scalar_select %p211, %s17, 1
      %s213 = smul.addr %s212, 2
      %s214 = smul.addr %s213, 8
      %s215 = scalar_lea.vmem %s4, %s214
      %p216 = pneg %p153
      %p217 = pneg %p150
      %p218 = scmp.lt.s32.totalorder %s17, 1
      %s219 = scalar_select %p218, %s17, 1
      %s220 = smul.addr %s219, 2
      %s221 = scalar_lea.vmem %s5, %s220
      %p222 = scmp.lt.s32.totalorder %s17, 1
      %s223 = scalar_select %p222, %s17, 1
      %s224 = smul.addr %s223, 2
      %s225 = smul.addr %s224, 8
      %s226 = scalar_lea.vmem %s0, %s225
      %p227 = scmp.lt.s32.totalorder %s17, 1
      %s228 = scalar_select %p227, %s17, 1
      %s229 = smul.addr %s228, 2
      %s230 = smul.addr %s229, 8
      %s231 = scalar_lea.vmem %s4, %s230
      %p232 = scmp.lt.s32.totalorder %s17, 1
      %s233 = scalar_select %p232, %s17, 1
      %s234 = smul.addr %s233, 2
      %s235 = scalar_lea.vmem %s5, %s234
      %v236 = vld [vmem:[%s226] sm:$0xff]
      %v237 = vld [vmem:[%s226 + $0x8] sm:$0xff]
      %v238 = vld [vmem:[%s2] sm:$0x1]
      %v240 = vlaneseq
      %v241 = vshrl.u32 %v240, 7
      %v242 = vsub.s32 0, %v241
      %v243 = vrot.slane %v238, %v242
      %v245 = vmul.f32 %v236, %v243
      %v246 = vmul.f32 %v237, %v243
      %v247 = vld [vmem:[%s3] sm:$0x1]
      %v249 = vlaneseq
      %v250 = vshrl.u32 %v249, 7
      %v251 = vsub.s32 0, %v250
      %v252 = vrot.slane %v247, %v251
      %v254 = vadd.f32 %v245, %v252
      %v255 = vadd.f32 %v246, %v252
      %v256 = vmax.f32 %v254, 0.0
      %v257 = vmax.f32 %v255, 0.0
      %258 = vst [vmem:[#allocation2] sm:$0x1] 0.0
      %259 = vst [vmem:[#allocation2 + $0x11] sm:$0x1] 0.0
      %260 = vst [vmem:[#allocation2 + $0x1] sm:$0xff] %v256
      %261 = vst [vmem:[#allocation2 + $0x9] sm:$0xff] %v257
      %v262 = vld [vmem:[#allocation2] sm:$0xff]
      %v263 = vld [vmem:[#allocation2 + $0x8] sm:$0xff]
      %v264 = vld [vmem:[%s1] sm:$0xff]
      %v265 = vld [vmem:[%s1 + $0x8] sm:$0xff]
      %v266 = vld [vmem:[%s1 + $0x10] sm:$0xff]
      %v267 = vld [vmem:[%s1 + $0x18] sm:$0xff]
      %v268 = vld [vmem:[%s1 + $0x20] sm:$0xff]
      %v269 = vld [vmem:[%s1 + $0x28] sm:$0xff]
      %v270 = vld [vmem:[%s1 + $0x30] sm:$0xff]
      %v271 = vld [vmem:[%s1 + $0x38] sm:$0xff]
      %v272 = vld [vmem:[%s1 + $0x40] sm:$0xff]
      %v273 = vld [vmem:[%s1 + $0x48] sm:$0xff]
      %v274 = vld [vmem:[%s1 + $0x50] sm:$0xff]
      %v275 = vld [vmem:[%s1 + $0x58] sm:$0xff]
      %v276 = vld [vmem:[%s1 + $0x60] sm:$0xff]
      %v277 = vld [vmem:[%s1 + $0x68] sm:$0xff]
      %v278 = vld [vmem:[%s1 + $0x70] sm:$0xff]
      %v279 = vld [vmem:[%s1 + $0x78] sm:$0xff]
      %v280 = vld [vmem:[#allocation2 + $0x1] sm:$0xff]
      %v281 = vld [vmem:[#allocation2 + $0x9] sm:$0xff]
      %s282 = scalar_lea.vmem %s1, 128
      %v283 = vld [vmem:[%s282] sm:$0xff]
      %v284 = vld [vmem:[%s282 + $0x8] sm:$0xff]
      %v285 = vld [vmem:[%s282 + $0x10] sm:$0xff]
      %v286 = vld [vmem:[%s282 + $0x18] sm:$0xff]
      %v287 = vld [vmem:[%s282 + $0x20] sm:$0xff]
      %v288 = vld [vmem:[%s282 + $0x28] sm:$0xff]
      %v289 = vld [vmem:[%s282 + $0x30] sm:$0xff]
      %v290 = vld [vmem:[%s282 + $0x38] sm:$0xff]
      %v291 = vld [vmem:[%s282 + $0x40] sm:$0xff]
      %v292 = vld [vmem:[%s282 + $0x48] sm:$0xff]
      %v293 = vld [vmem:[%s282 + $0x50] sm:$0xff]
      %v294 = vld [vmem:[%s282 + $0x58] sm:$0xff]
      %v295 = vld [vmem:[%s282 + $0x60] sm:$0xff]
      %v296 = vld [vmem:[%s282 + $0x68] sm:$0xff]
      %v297 = vld [vmem:[%s282 + $0x70] sm:$0xff]
      %v298 = vld [vmem:[%s282 + $0x78] sm:$0xff]
      %299 = vmatprep.subr.mxu0 0.0
      %300 = vmatpush1.msra.mxu0 %v283
      %301 = vmatprep.subr.mxu0 0.0
      %302 = vmatpush1.msra.mxu0 %v284
      %303 = vmatprep.subr.mxu0 0.0
      %304 = vmatpush1.msra.mxu0 %v285
      %305 = vmatprep.subr.mxu0 0.0
      %306 = vmatpush1.msra.mxu0 %v286
      %307 = vmatprep.subr.mxu0 0.0
      %308 = vmatpush1.msra.mxu0 %v287
      %309 = vmatprep.subr.mxu0 0.0
      %310 = vmatpush1.msra.mxu0 %v288
      %311 = vmatprep.subr.mxu0 0.0
      %312 = vmatpush1.msra.mxu0 %v289
      %313 = vmatprep.subr.mxu0 0.0
      %314 = vmatpush1.msra.mxu0 %v290
      %315 = vmatprep.subr.mxu0 0.0
      %316 = vmatpush1.msra.mxu0 %v291
      %317 = vmatprep.subr.mxu0 0.0
      %318 = vmatpush1.msra.mxu0 %v292
      %319 = vmatprep.subr.mxu0 0.0
      %320 = vmatpush1.msra.mxu0 %v293
      %321 = vmatprep.subr.mxu0 0.0
      %322 = vmatpush1.msra.mxu0 %v294
      %323 = vmatprep.subr.mxu0 0.0
      %324 = vmatpush1.msra.mxu0 %v295
      %325 = vmatprep.subr.mxu0 0.0
      %326 = vmatpush1.msra.mxu0 %v296
      %327 = vmatprep.subr.mxu0 0.0
      %328 = vmatpush1.msra.mxu0 %v297
      %329 = vmatprep.subr.mxu0 0.0
      %330 = vmatpush1.msra.mxu0 %v298
      %331 = vmatprep.subr.mxu0 0.0
      %332 = vmatpush1.msra.mxu0 0.0
      %333 = vmatprep.subr.mxu0 0.0
      %334 = vmatpush1.msra.mxu0 0.0
      %335 = vmatprep.subr.mxu0 0.0
      %336 = vmatpush1.msra.mxu0 0.0
      %337 = vmatprep.subr.mxu0 0.0
      %338 = vmatpush1.msra.mxu0 0.0
      %339 = vmatprep.subr.mxu0 0.0
      %340 = vmatpush1.msra.mxu0 0.0
      %341 = vmatprep.subr.mxu0 0.0
      %342 = vmatpush1.msra.mxu0 0.0
      %343 = vmatprep.subr.mxu0 0.0
      %344 = vmatpush1.msra.mxu0 0.0
      %345 = vmatprep.subr.mxu0 0.0
      %346 = vmatpush1.msra.mxu0 0.0
      %347 = vmatprep.subr.mxu0 0.0
      %348 = vmatpush1.msra.mxu0 0.0
      %349 = vmatprep.subr.mxu0 0.0
      %350 = vmatpush1.msra.mxu0 0.0
      %351 = vmatprep.subr.mxu0 0.0
      %352 = vmatpush1.msra.mxu0 0.0
      %353 = vmatprep.subr.mxu0 0.0
      %354 = vmatpush1.msra.mxu0 0.0
      %355 = vmatprep.subr.mxu0 0.0
      %356 = vmatpush1.msra.mxu0 0.0
      %357 = vmatprep.subr.mxu0 0.0
      %358 = vmatpush1.msra.mxu0 0.0
      %359 = vmatprep.subr.mxu0 0.0
      %360 = vmatpush1.msra.mxu0 0.0
      %361 = vmatprep.subr.mxu0 0.0
      %362 = vmatpush1.msra.mxu0 0.0
      %363 = vmatprep.mubr.f32.mxu0 0.0
      %364 = vmatmul.mubr.f32.gmra.mrb[0].mxu0 %v280
      %v365 = vpop.f32.mrb[0].mxu0
      %v366 = vadd.f32 0.0, %v365
      %v367 = vpop.f32.mrb[0].mxu0
      %368 = vmatprep.mubr.f32.mxu0 0.0
      %369 = vmatmul.mubr.f32.gmra.mrb[0].mxu0 %v281
      %v370 = vpop.f32.mrb[0].mxu0
      %v371 = vadd.f32 0.0, %v370
      %v372 = vpop.f32.mrb[0].mxu0
      %373 = vdwg.mxu0
      %374 = vmatprep.subr.mxu0 0.0
      %375 = vmatpush1.msra.mxu0 %v264
      %376 = vmatprep.subr.mxu0 0.0
      %377 = vmatpush1.msra.mxu0 %v265
      %378 = vmatprep.subr.mxu0 0.0
      %379 = vmatpush1.msra.mxu0 %v266
      %380 = vmatprep.subr.mxu0 0.0
      %381 = vmatpush1.msra.mxu0 %v267
      %382 = vmatprep.subr.mxu0 0.0
      %383 = vmatpush1.msra.mxu0 %v268
      %384 = vmatprep.subr.mxu0 0.0
      %385 = vmatpush1.msra.mxu0 %v269
      %386 = vmatprep.subr.mxu0 0.0
      %387 = vmatpush1.msra.mxu0 %v270
      %388 = vmatprep.subr.mxu0 0.0
      %389 = vmatpush1.msra.mxu0 %v271
      %390 = vmatprep.subr.mxu0 0.0
      %391 = vmatpush1.msra.mxu0 %v272
      %392 = vmatprep.subr.mxu0 0.0
      %393 = vmatpush1.msra.mxu0 %v273
      %394 = vmatprep.subr.mxu0 0.0
      %395 = vmatpush1.msra.mxu0 %v274
      %396 = vmatprep.subr.mxu0 0.0
      %397 = vmatpush1.msra.mxu0 %v275
      %398 = vmatprep.subr.mxu0 0.0
      %399 = vmatpush1.msra.mxu0 %v276
      %400 = vmatprep.subr.mxu0 0.0
      %401 = vmatpush1.msra.mxu0 %v277
      %402 = vmatprep.subr.mxu0 0.0
      %403 = vmatpush1.msra.mxu0 %v278
      %404 = vmatprep.subr.mxu0 0.0
      %405 = vmatpush1.msra.mxu0 %v279
      %406 = vmatprep.subr.mxu0 0.0
      %407 = vmatpush1.msra.mxu0 0.0
      %408 = vmatprep.subr.mxu0 0.0
      %409 = vmatpush1.msra.mxu0 0.0
      %410 = vmatprep.subr.mxu0 0.0
      %411 = vmatpush1.msra.mxu0 0.0
      %412 = vmatprep.subr.mxu0 0.0
      %413 = vmatpush1.msra.mxu0 0.0
      %414 = vmatprep.subr.mxu0 0.0
      %415 = vmatpush1.msra.mxu0 0.0
      %416 = vmatprep.subr.mxu0 0.0
      %417 = vmatpush1.msra.mxu0 0.0
      %418 = vmatprep.subr.mxu0 0.0
      %419 = vmatpush1.msra.mxu0 0.0
      %420 = vmatprep.subr.mxu0 0.0
      %421 = vmatpush1.msra.mxu0 0.0
      %422 = vmatprep.subr.mxu0 0.0
      %423 = vmatpush1.msra.mxu0 0.0
      %424 = vmatprep.subr.mxu0 0.0
      %425 = vmatpush1.msra.mxu0 0.0
      %426 = vmatprep.subr.mxu0 0.0
      %427 = vmatpush1.msra.mxu0 0.0
      %428 = vmatprep.subr.mxu0 0.0
      %429 = vmatpush1.msra.mxu0 0.0
      %430 = vmatprep.subr.mxu0 0.0
      %431 = vmatpush1.msra.mxu0 0.0
      %432 = vmatprep.subr.mxu0 0.0
      %433 = vmatpush1.msra.mxu0 0.0
      %434 = vmatprep.subr.mxu0 0.0
      %435 = vmatpush1.msra.mxu0 0.0
      %436 = vmatprep.subr.mxu0 0.0
      %437 = vmatpush1.msra.mxu0 0.0
      %438 = vmatprep.mubr.f32.mxu0 0.0
      %439 = vmatmul.mubr.f32.gmra.mrb[0].mxu0 %v262
      %v440 = vpop.f32.mrb[0].mxu0
      %v441 = vadd.f32 %v366, %v440
      %v442 = vpop.f32.mrb[0].mxu0
      %443 = vmatprep.mubr.f32.mxu0 0.0
      %444 = vmatmul.mubr.f32.gmra.mrb[0].mxu0 %v263
      %v445 = vpop.f32.mrb[0].mxu0
      %v446 = vadd.f32 %v371, %v445
      %v447 = vpop.f32.mrb[0].mxu0
      %448 = vdwg.mxu0
      %v449 = vld [vmem:[#allocation2 + $0x2] sm:$0xff]
      %v450 = vld [vmem:[#allocation2 + $0xa] sm:$0xff]
      %s451 = scalar_lea.vmem %s1, 256
      %v452 = vld [vmem:[%s451] sm:$0xff]
      %v453 = vld [vmem:[%s451 + $0x8] sm:$0xff]
      %v454 = vld [vmem:[%s451 + $0x10] sm:$0xff]
      %v455 = vld [vmem:[%s451 + $0x18] sm:$0xff]
      %v456 = vld [vmem:[%s451 + $0x20] sm:$0xff]
      %v457 = vld [vmem:[%s451 + $0x28] sm:$0xff]
      %v458 = vld [vmem:[%s451 + $0x30] sm:$0xff]
      %v459 = vld [vmem:[%s451 + $0x38] sm:$0xff]
      %v460 = vld [vmem:[%s451 + $0x40] sm:$0xff]
      %v461 = vld [vmem:[%s451 + $0x48] sm:$0xff]
      %v462 = vld [vmem:[%s451 + $0x50] sm:$0xff]
      %v463 = vld [vmem:[%s451 + $0x58] sm:$0xff]
      %v464 = vld [vmem:[%s451 + $0x60] sm:$0xff]
      %v465 = vld [vmem:[%s451 + $0x68] sm:$0xff]
      %v466 = vld [vmem:[%s451 + $0x70] sm:$0xff]
      %v467 = vld [vmem:[%s451 + $0x78] sm:$0xff]
      %468 = vmatprep.subr.mxu0 0.0
      %469 = vmatpush1.msra.mxu0 %v452
      %470 = vmatprep.subr.mxu0 0.0
      %471 = vmatpush1.msra.mxu0 %v453
      %472 = vmatprep.subr.mxu0 0.0
      %473 = vmatpush1.msra.mxu0 %v454
      %474 = vmatprep.subr.mxu0 0.0
      %475 = vmatpush1.msra.mxu0 %v455
      %476 = vmatprep.subr.mxu0 0.0
      %477 = vmatpush1.msra.mxu0 %v456
      %478 = vmatprep.subr.mxu0 0.0
      %479 = vmatpush1.msra.mxu0 %v457
      %480 = vmatprep.subr.mxu0 0.0
      %481 = vmatpush1.msra.mxu0 %v458
      %482 = vmatprep.subr.mxu0 0.0
      %483 = vmatpush1.msra.mxu0 %v459
      %484 = vmatprep.subr.mxu0 0.0
      %485 = vmatpush1.msra.mxu0 %v460
      %486 = vmatprep.subr.mxu0 0.0
      %487 = vmatpush1.msra.mxu0 %v461
      %488 = vmatprep.subr.mxu0 0.0
      %489 = vmatpush1.msra.mxu0 %v462
      %490 = vmatprep.subr.mxu0 0.0
      %491 = vmatpush1.msra.mxu0 %v463
      %492 = vmatprep.subr.mxu0 0.0
      %493 = vmatpush1.msra.mxu0 %v464
      %494 = vmatprep.subr.mxu0 0.0
      %495 = vmatpush1.msra.mxu0 %v465
      %496 = vmatprep.subr.mxu0 0.0
      %497 = vmatpush1.msra.mxu0 %v466
      %498 = vmatprep.subr.mxu0 0.0
      %499 = vmatpush1.msra.mxu0 %v467
      %500 = vmatprep.subr.mxu0 0.0
      %501 = vmatpush1.msra.mxu0 0.0
      %502 = vmatprep.subr.mxu0 0.0
      %503 = vmatpush1.msra.mxu0 0.0
      %504 = vmatprep.subr.mxu0 0.0
      %505 = vmatpush1.msra.mxu0 0.0
      %506 = vmatprep.subr.mxu0 0.0
      %507 = vmatpush1.msra.mxu0 0.0
      %508 = vmatprep.subr.mxu0 0.0
      %509 = vmatpush1.msra.mxu0 0.0
      %510 = vmatprep.subr.mxu0 0.0
      %511 = vmatpush1.msra.mxu0 0.0
      %512 = vmatprep.subr.mxu0 0.0
      %513 = vmatpush1.msra.mxu0 0.0
      %514 = vmatprep.subr.mxu0 0.0
      %515 = vmatpush1.msra.mxu0 0.0
      %516 = vmatprep.subr.mxu0 0.0
      %517 = vmatpush1.msra.mxu0 0.0
      %518 = vmatprep.subr.mxu0 0.0
      %519 = vmatpush1.msra.mxu0 0.0
      %520 = vmatprep.subr.mxu0 0.0
      %521 = vmatpush1.msra.mxu0 0.0
      %522 = vmatprep.subr.mxu0 0.0
      %523 = vmatpush1.msra.mxu0 0.0
      %524 = vmatprep.subr.mxu0 0.0
      %525 = vmatpush1.msra.mxu0 0.0
      %526 = vmatprep.subr.mxu0 0.0
      %527 = vmatpush1.msra.mxu0 0.0
      %528 = vmatprep.subr.mxu0 0.0
      %529 = vmatpush1.msra.mxu0 0.0
      %530 = vmatprep.subr.mxu0 0.0
      %531 = vmatpush1.msra.mxu0 0.0
      %532 = vmatprep.mubr.f32.mxu0 0.0
      %533 = vmatmul.mubr.f32.gmra.mrb[0].mxu0 %v449
      %v534 = vpop.f32.mrb[0].mxu0
      %v535 = vadd.f32 0.0, %v534
      %v536 = vpop.f32.mrb[0].mxu0
      %537 = vmatprep.mubr.f32.mxu0 0.0
      %538 = vmatmul.mubr.f32.gmra.mrb[0].mxu0 %v450
      %v539 = vpop.f32.mrb[0].mxu0
      %v540 = vadd.f32 0.0, %v539
      %v541 = vpop.f32.mrb[0].mxu0
      %542 = vdwg.mxu0
      %v543 = vadd.f32 %v441, %v535
      %v544 = vadd.f32 %v446, %v540
      %v545 = vadd.f32 %v543, %v544
      %v546 = vrot.slane %v545, 4
      %v547 = vadd.f32 %v545, %v546
      %v548 = vrot.slane %v547, 2
      %v549 = vadd.f32 %v547, %v548
      %v550 = vrot.slane %v549, 1
      %v551 = vadd.f32 %v549, %v550
      %552 = vst [vmem:[%s235] sm:$0x1] %v551
      %v553 = vmul.f32 %v543, %v543
      %v554 = vmul.f32 %v544, %v544
      %v555 = vadd.f32 %v553, %v554
      %v556 = vrot.slane %v555, 4
      %v557 = vadd.f32 %v555, %v556
      %v558 = vrot.slane %v557, 2
      %v559 = vadd.f32 %v557, %v558
      %v560 = vrot.slane %v559, 1
      %v561 = vadd.f32 %v559, %v560
      %562 = vst [vmem:[%s235 + $0x1] sm:$0x1] %v561
      %563 = vst [vmem:[%s231] sm:$0xff] %v543
      %564 = vst [vmem:[%s231 + $0x8] sm:$0xff] %v544
      %p565 = scmp.lt.s32.totalorder %s17, 1
      %s566 = scalar_select %p565, %s17, 1
      %s567 = smul.addr %s566, 2
      %s568 = smul.addr %s567, 8
      %s569 = scalar_lea.vmem %s4, %s568
      %p570 = scmp.lt.s32.totalorder %s17, 1
      %s571 = scalar_select %p570, %s17, 1
      %s572 = smul.addr %s571, 2
      %s573 = scalar_lea.vmem %s5, %s572
      // Predicated region
      $region37: #{residual_block.4} parent=35 // pred_check
        %p574 = pneg %p124
      $region38: #{residual_block.4} parent=35 // pred_check_branch
        %576 = sbr.rel (%p574) target = $region40
      $region39: #{residual_block.4} parent=35 // pred_region
        _
      $region40: #{residual_block.4} parent=35 // pred_fallthru
        _
      // Predicated region
      $region41: #{residual_block.4} parent=35 // pred_check
        %p577 = pneg %p150
      $region42: #{residual_block.4} parent=35 // pred_check_branch
        %579 = sbr.rel (%p577) target = $region44
      $region43: #{residual_block.4} parent=35 // pred_region
        _
      $region44: #{residual_block.4} parent=35 // pred_fallthru
        _
    $region36: #{residual_block.4} parent=5 // pred_fallthru
      _
    %p580 = scmp.le.s32.totalorder 2, %s12
    // Predicated region
    $region45: #{residual_block.4} parent=5 // pred_check
      %p581 = pneg %p580
    $region46: #{residual_block.4} parent=5 // pred_check_branch
      %583 = sbr.rel (%p581) target = $region48
    $region47: #{residual_block.4} parent=5 // pred_region
      %s584 = ssub.s32 %s12, 2
      // Predicated region
      $region49: #{residual_block.4} parent=47 // pred_check
        %p585 = pneg %p130
      $region50: #{residual_block.4} parent=47 // pred_check_branch
        %587 = sbr.rel (%p585) target = $region52
      $region51: #{residual_block.4} parent=47 // pred_region
        %p588 = scmp.lt.s32.totalorder %s18, 1
        %s589 = scalar_select %p588, %s18, 1
        %s590 = smul.addr %s589, 2
        %s591 = smul.addr %s590, 8
        %s592 = scalar_lea.vmem %s4, %s591
      $region52: #{residual_block.4} parent=47 // pred_fallthru
        _
      // Predicated region
      $region53: #{residual_block.4} parent=47 // pred_check
        %p593 = pneg %p156
      $region54: #{residual_block.4} parent=47 // pred_check_branch
        %595 = sbr.rel (%p593) target = $region56
      $region55: #{residual_block.4} parent=47 // pred_region
        %p596 = scmp.lt.s32.totalorder %s18, 1
        %s597 = scalar_select %p596, %s18, 1
        %s598 = smul.addr %s597, 2
        %s599 = scalar_lea.vmem %s5, %s598
      $region56: #{residual_block.4} parent=47 // pred_fallthru
        _
    $region48: #{residual_block.4} parent=5 // pred_fallthru
      _
  $region6: #{residual_block.4} parent=0 // loop_footer
    %s16 = sadd.s32 1, %s12
  $region7: #{residual_block.4} parent=0 // loop_footer_branch
    %11 = sbr.rel target = $region3
  $region8: #{residual_block.4} parent=0 // loop_exit
    _

// kernel: residual_block.5
$region0: #{residual_block.5}
  #allocation0 [shape = 'u32[]', space=smem, size = 0x4, offset = 0x4, fixed_abs, tag = 'smem constant byte address 0x4 - core index']
  #allocation1 [shape = 'u32[144,128]{1,0:T(1,128)}', space=vmem, size = 0x12000, scoped, tag = 'internal scratch']
  %s0 = inlined_call_operand.vmem [shape: f32[32,128], index: 0, kind: input, shape index: {}]
  %s1 = inlined_call_operand.vmem [shape: f32[32,128], index: 1, kind: input, shape index: {}]
  %s2 = inlined_call_operand.vmem [shape: f32[1,128], index: 2, kind: input, shape index: {}]
  %s3 = inlined_call_operand.vmem [shape: f32[1,128], index: 3, kind: input, shape index: {}]
  %s4 = inlined_call_operand.vmem [shape: f32[1,128], index: 4, kind: input, shape index: {}]
  %s5 = inlined_call_operand.vmem [shape: f32[1,128], index: 5, kind: input, shape index: {}]
  %s6 = inlined_call_operand.vmem [shape: f32[32,128], index: 6, kind: output, shape index: {}]
  %s7 = sld [smem:[#allocation0]]
  $region57: #{residual_block.5} parent=0
    _
  %s9 = ssub.s32 1, %s7
  %s10 = scalar_select 0, %s9, %s7
  loop: start=0, step=1, limit=4
  $region2: #{residual_block.5} parent=0 // loop_pre_header
    _
  $region3: #{residual_block.5} parent=0 // loop_header
    %s12 = sphi 0, %s16
    %p13 = scmp.ge.s32.totalorder %s12, 4
    %s22 = sphi 0, %s24
    %s25 = sphi 0, %s22
    %s26 = sphi 0, %s25
    %s42 = sphi 0, %s26
    %s48 = sphi 0, %s50
    %s51 = sphi 0, %s48
    %s52 = sphi 0, %s51
    %s68 = sphi 0, %s52
    %s72 = sphi 0, %s72
    %s74 = sphi 0, %s72
    %s75 = sphi 0, %s74
    %s89 = sphi 0, %s75
    %s93 = sphi 0, %s93
    %s95 = sphi 0, %s93
    %s96 = sphi 0, %s95
    %s110 = sphi 0, %s96
    %s114 = sphi 0, %s114
    %s116 = sphi 0, %s114
    %s117 = sphi 0, %s116
    %s131 = sphi 0, %s117
    %s135 = sphi 0, %s135
    %s137 = sphi 0, %s135
    %s138 = sphi 0, %s137
    %s152 = sphi 0, %s138
    %s158 = sphi 0, %s160
    %s161 = sphi 0, %s158
    %s162 = sphi 0, %s161
    %s178 = sphi 0, %s162
  $region4: #{residual_block.5} parent=0 // loop_header_branch
    %15 = sbr.rel (%p13) target = $region8
  $region5: #{residual_block.5} parent=0 // loop_body
    %s17 = ssub.s32 %s12, 1
    %s18 = ssub.s32 %s12, 2
    %s19 = sadd.s32 %s12, 1
    %s20 = ssub.s32 %s12, %s19
    %p21 = scmp.eq.s32.totalorder %s20, 0
    %s23 = sadd.s32 %s22, 1
    %s24 = scalar_select %p21, %s22, %s23
    %p27 = pneg %p21
    %p28 = scmp.eq.s32.totalorder %s12, 1
    %p29 = por %p27, %p28
    %p30 = scmp.ne.s32.totalorder %s22, %s25
    %p31 = scmp.eq.s32.totalorder %s12, 0
    %p32 = por %p30, %p31
    %p33 = scmp.ne.s32.totalorder %s22, %s25
    %p34 = scmp.eq.s32.totalorder %s17, 1
    %p35 = por %p33, %p34
    %p36 = scmp.ne.s32.totalorder %s25, %s26
    %p37 = scmp.eq.s32.totalorder %s17, 0
    %p38 = por %p36, %p37
    %p39 = scmp.ne.s32.totalorder %s25, %s26
    %p40 = scmp.eq.s32.totalorder %s18, 1
    %p41 = por %p39, %p40
    %p43 = scmp.ne.s32.totalorder %s26, %s42
    %p44 = scmp.eq.s32.totalorder %s18, 0
    %p45 = por %p43, %p44
    %s46 = ssub.s32 %s12, %s19
    %p47 = scmp.eq.s32.totalorder %s46, 0
    %s49 = sadd.s32 %s48, 1
    %s50 = scalar_select %p47, %s48, %s49
    %p53 = pneg %p47
    %p54 = scmp.eq.s32.totalorder %s12, 1
    %p55 = por %p53, %p54
    %p56 = scmp.ne.s32.totalorder %s48, %s51
    %p57 = scmp.eq.s32.totalorder %s12, 0
    %p58 = por %p56, %p57
    %p59 = scmp.ne.s32.totalorder %s48, %s51
    %p60 = scmp.eq.s32.totalorder %s17, 1
    %p61 = por %p59, %p60
    %p62 = scmp.ne.s32.totalorder %s51, %s52
    %p63 = scmp.eq.s32.totalorder %s17, 0
    %p64 = por %p62, %p63
    %p65 = scmp.ne.s32.totalorder %s51, %s52
    %p66 = scmp.eq.s32.totalorder %s18, 1
    %p67 = por %p65, %p66
    %p69 = scmp.ne.s32.totalorder %s52, %s68
    %p70 = scmp.eq.s32.totalorder %s18, 0
    %p71 = por %p69, %p70
    %s73 = sadd.s32 %s72, 1
    %p76 = scmp.eq.s32.totalorder %s12, 1
    %p77 = scmp.ne.s32.totalorder %s72, %s74
    %p78 = scmp.eq.s32.totalorder %s12, 0
    %p79 = por %p77, %p78
    %p80 = scmp.ne.s32.totalorder %s72, %s74
    %p81 = scmp.eq.s32.totalorder %s17, 1
    %p82 = por %p80, %p81
    %p83 = scmp.ne.s32.totalorder %s74, %s75
    %p84 = scmp.eq.s32.totalorder %s17, 0
    %p85 = por %p83, %p84
    %p86 = scmp.ne.s32.totalorder %s74, %s75
    %p87 = scmp.eq.s32.totalorder %s18, 1
    %p88 = por %p86, %p87
    %p90 = scmp.ne.s32.totalorder %s75, %s89
    %p91 = scmp.eq.s32.totalorder %s18, 0
    %p92 = por %p90, %p91
    %s94 = sadd.s32 %s93, 1
    %p97 = scmp.eq.s32.totalorder %s12, 1
    %p98 = scmp.ne.s32.totalorder %s93, %s95
    %p99 = scmp.eq.s32.totalorder %s12, 0
    %p100 = por %p98, %p99
    %p101 = scmp.ne.s32.totalorder %s93, %s95
    %p102 = scmp.eq.s32.totalorder %s17, 1
    %p103 = por %p101, %p102
    %p104 = scmp.ne.s32.totalorder %s95, %s96
    %p105 = scmp.eq.s32.totalorder %s17, 0
    %p106 = por %p104, %p105
    %p107 = scmp.ne.s32.totalorder %s95, %s96
    %p108 = scmp.eq.s32.totalorder %s18, 1
    %p109 = por %p107, %p108
    %p111 = scmp.ne.s32.totalorder %s96, %s110
    %p112 = scmp.eq.s32.totalorder %s18, 0
    %p113 = por %p111, %p112
    %s115 = sadd.s32 %s114, 1
    %p118 = scmp.eq.s32.totalorder %s12, 1
    %p119 = scmp.ne.s32.totalorder %s114, %s116
    %p120 = scmp.eq.s32.totalorder %s12, 0
    %p121 = por %p119, %p120
    %p122 = scmp.ne.s32.totalorder %s114, %s116
    %p123 = scmp.eq.s32.totalorder %s17, 1
    %p124 = por %p122, %p123
    %p125 = scmp.ne.s32.totalorder %s116, %s117
    %p126 = scmp.eq.s32.totalorder %s17, 0
    %p127 = por %p125, %p126
    %p128 = scmp.ne.s32.totalorder %s116, %s117
    %p129 = scmp.eq.s32.totalorder %s18, 1
    %p130 = por %p128, %p129
    %p132 = scmp.ne.s32.totalorder %s117, %s131
    %p133 = scmp.eq.s32.totalorder %s18, 0
    %p134 = por %p132, %p133
    %s136 = sadd.s32 %s135, 1
    %p139 = scmp.eq.s32.totalorder %s12, 1
    %p140 = scmp.ne.s32.totalorder %s135, %s137
    %p141 = scmp.eq.s32.totalorder %s12, 0
    %p142 = por %p140, %p141
    %p143 = scmp.ne.s32.totalorder %s135, %s137
    %p144 = scmp.eq.s32.totalorder %s17, 1
    %p145 = por %p143, %p144
    %p146 = scmp.ne.s32.totalorder %s137, %s138
    %p147 = scmp.eq.s32.totalorder %s17, 0
    %p148 = por %p146, %p147
    %p149 = scmp.ne.s32.totalorder %s137, %s138
    %p150 = scmp.eq.s32.totalorder %s18, 1
    %p151 = por %p149, %p150
    %p153 = scmp.ne.s32.totalorder %s138, %s152
    %p154 = scmp.eq.s32.totalorder %s18, 0
    %p155 = por %p153, %p154
    %s156 = ssub.s32 %s12, %s19
    %p157 = scmp.eq.s32.totalorder %s156, 0
    %s159 = sadd.s32 %s158, 1
    %s160 = scalar_select %p157, %s158, %s159
    %p163 = pneg %p157
    %p164 = scmp.eq.s32.totalorder %s12, 1
    %p165 = por %p163, %p164
    %p166 = scmp.ne.s32.totalorder %s158, %s161
    %p167 = scmp.eq.s32.totalorder %s12, 0
    %p168 = por %p166, %p167
    %p169 = scmp.ne.s32.totalorder %s158, %s161
    %p170 = scmp.eq.s32.totalorder %s17, 1
    %p171 = por %p169, %p170
    %p172 = scmp.ne.s32.totalorder %s161, %s162
    %p173 = scmp.eq.s32.totalorder %s17, 0
    %p174 = por %p172, %p173
    %p175 = scmp.ne.s32.totalorder %s161, %s162
    %p176 = scmp.eq.s32.totalorder %s18, 1
    %p177 = por %p175, %p176
    %p179 = scmp.ne.s32.totalorder %s162, %s178
    %p180 = scmp.eq.s32.totalorder %s18, 0
    %p181 = por %p179, %p180
    %p182 = scmp.le.s32.totalorder 1, %s12
    %p183 = scmp.lt.s32.totalorder %s12, 3
    %p184 = pnand %p182, %p183
    %p185 = pneg %p184
    // Predicated region
    $region9: #{residual_block.5} parent=5 // pred_check
      _
    $region10: #{residual_block.5} parent=5 // pred_check_branch
      %187 = sbr.rel (%p184) target = $region12
    $region11: #{residual_block.5} parent=5 // pred_region
      %s188 = ssub.s32 %s12, 1
      // Predicated region
      $region13: #{residual_block.5} parent=11 // pred_check
        %p189 = pneg %p85
      $region14: #{residual_block.5} parent=11 // pred_check_branch
        %191 = sbr.rel (%p189) target = $region16
      $region15: #{residual_block.5} parent=11 // pred_region
        _
      $region16: #{residual_block.5} parent=11 // pred_fallthru
        _
      // Predicated region
      $region17: #{residual_block.5} parent=11 // pred_check
        %p192 = pneg %p106
      $region18: #{residual_block.5} parent=11 // pred_check_branch
        %194 = sbr.rel (%p192) target = $region20
      $region19: #{residual_block.5} parent=11 // pred_region
        _
      $region20: #{residual_block.5} parent=11 // pred_fallthru
        _
      // Predicated region
      $region21: #{residual_block.5} parent=11 // pred_check
        %p195 = pneg %p127
      $region22: #{residual_block.5} parent=11 // pred_check_branch
        %197 = sbr.rel (%p195) target = $region24
      $region23: #{residual_block.5} parent=11 // pred_region
        _
      $region24: #{residual_block.5} parent=11 // pred_fallthru
        _
      // Predicated region
      $region25: #{residual_block.5} parent=11 // pred_check
        %p198 = pneg %p148
      $region26: #{residual_block.5} parent=11 // pred_check_branch
        %200 = sbr.rel (%p198) target = $region28
      $region27: #{residual_block.5} parent=11 // pred_region
        _
      $region28: #{residual_block.5} parent=11 // pred_fallthru
        _
    $region12: #{residual_block.5} parent=5 // pred_fallthru
      _
    %p201 = scmp.lt.s32.totalorder %s12, 2
    // Predicated region
    $region29: #{residual_block.5} parent=5 // pred_check
      %p202 = pneg %p201
    $region30: #{residual_block.5} parent=5 // pred_check_branch
      %204 = sbr.rel (%p202) target = $region32
    $region31: #{residual_block.5} parent=5 // pred_region
      // Predicated region
      $region33: #{residual_block.5} parent=31 // pred_check
        %p205 = pneg %p32
      $region34: #{residual_block.5} parent=31 // pred_check_branch
        %207 = sbr.rel (%p205) target = $region36
      $region35: #{residual_block.5} parent=31 // pred_region
        %s208 = smul.u32 2, %s12
        %p209 = scmp.lt.s32.totalorder %s208, 3
        %s210 = scalar_select %p209, %s208, 3
        %s211 = smul.addr %s210, 8
        %s212 = scalar_lea.vmem %s0, %s211
        %s213 = smul.u32 2, %s12
      $region36: #{residual_block.5} parent=31 // pred_fallthru
        _
      // Predicated region
      $region37: #{residual_block.5} parent=31 // pred_check
        %p214 = pneg %p58
      $region38: #{residual_block.5} parent=31 // pred_check_branch
        %216 = sbr.rel (%p214) target = $region40
      $region39: #{residual_block.5} parent=31 // pred_region
        %s217 = smul.u32 2, %s12
        %p218 = scmp.lt.s32.totalorder %s217, 3
        %s219 = scalar_select %p218, %s217, 3
        %s220 = smul.addr %s219, 8
        %s221 = scalar_lea.vmem %s1, %s220
        %s222 = smul.u32 2, %s12
      $region40: #{residual_block.5} parent=31 // pred_fallthru
        _
    $region32: #{residual_block.5} parent=5 // pred_fallthru
      _
    %p223 = scmp.le.s32.totalorder 1, %s12
    %p224 = scmp.lt.s32.totalorder %s12, 3
    %p225 = pnand %p223, %p224
    %p226 = pneg %p225
    // Predicated region
    $region41: #{residual_block.5} parent=5 // pred_check
      _
    $region42: #{residual_block.5} parent=5 // pred_check_branch
      %228 = sbr.rel (%p225) target = $region44
    $region43: #{residual_block.5} parent=5 // pred_region
      %s229 = ssub.s32 %s12, 1
      %s230 = smul.u32 2, %s17
      %p231 = scmp.lt.s32.totalorder %s230, 3
      %s232 = scalar_select %p231, %s230, 3
      %s233 = smul.addr %s232, 8
      %s234 = scalar_lea.vmem %s0, %s233
      %p235 = pneg %p38
      %p236 = pneg %p35
      %s237 = smul.u32 2, %s17
      %p238 = scmp.lt.s32.totalorder %s237, 3
      %s239 = scalar_select %p238, %s237, 3
      %s240 = smul.addr %s239, 8
      %s241 = scalar_lea.vmem %s1, %s240
      %p242 = pneg %p64
      %p243 = pneg %p61
      %p244 = pneg %p85
      %p245 = pneg %p82
      %p246 = pneg %p106
      %p247 = pneg %p103
      %p248 = pneg %p127
      %p249 = pneg %p124
      %p250 = pneg %p148
      %p251 = pneg %p145
      %p252 = pneg %p174
      %p253 = pneg %p171
      %s254 = smul.u32 2, %s17
      %p255 = scmp.lt.s32.totalorder %s254, 3
      %s256 = scalar_select %p255, %s254, 3
      %s257 = smul.addr %s256, 8
      %s258 = scalar_lea.vmem %s6, %s257
      %s259 = smul.u32 2, %s17
      %p260 = scmp.lt.s32.totalorder %s259, 3
      %s261 = scalar_select %p260, %s259, 3
      %s262 = smul.addr %s261, 8
      %s263 = scalar_lea.vmem %s0, %s262
      %s264 = smul.u32 2, %s17
      %s265 = smul.u32 2, %s17
      %p266 = scmp.lt.s32.totalorder %s265, 3
      %s267 = scalar_select %p266, %s265, 3
      %s268 = smul.addr %s267, 8
      %s269 = scalar_lea.vmem %s1, %s268
      %s270 = smul.u32 2, %s17
      %s271 = smul.u32 2, %s17
      %p272 = scmp.lt.s32.totalorder %s271, 3
      %s273 = scalar_select %p272, %s271, 3
      %s274 = smul.addr %s273, 8
      %s275 = scalar_lea.vmem %s6, %s274
      %s276 = smul.u32 2, %s17
      %v277 = vld [vmem:[%s263] sm:$0xff]
      %v278 = vld [vmem:[%s263 + $0x8] sm:$0xff]
      %v279 = vld [vmem:[%s2] sm:$0x1]
      %v281 = vlaneseq
      %v282 = vshrl.u32 %v281, 7
      %v283 = vsub.s32 0, %v282
      %v284 = vrot.slane %v279, %v283
      %v286 = vmul.f32 %v277, %v284
      %v287 = vmul.f32 %v278, %v284
      %v288 = vld [vmem:[%s3] sm:$0x1]
      %v290 = vlaneseq
      %v291 = vshrl.u32 %v290, 7
      %v292 = vsub.s32 0, %v291
      %v293 = vrot.slane %v288, %v292
      %v295 = vadd.f32 %v286, %v293
      %v296 = vadd.f32 %v287, %v293
      %v297 = vld [vmem:[%s269] sm:$0xff]
      %v298 = vld [vmem:[%s269 + $0x8] sm:$0xff]
      %v299 = vld [vmem:[%s4] sm:$0x1]
      %v301 = vlaneseq
      %v302 = vshrl.u32 %v301, 7
      %v303 = vsub.s32 0, %v302
      %v304 = vrot.slane %v299, %v303
      %v306 = vmul.f32 %v297, %v304
      %v307 = vmul.f32 %v298, %v304
      %v308 = vld [vmem:[%s5] sm:$0x1]
      %v310 = vlaneseq
      %v311 = vshrl.u32 %v310, 7
      %v312 = vsub.s32 0, %v311
      %v313 = vrot.slane %v308, %v312
      %v315 = vadd.f32 %v306, %v313
      %v316 = vadd.f32 %v307, %v313
      %v317 = vadd.f32 %v295, %v315
      %v318 = vadd.f32 %v296, %v316
      %v319 = vmax.f32 %v317, 0.0
      %v320 = vmax.f32 %v318, 0.0
      %321 = vst [vmem:[%s275] sm:$0xff] %v319
      %322 = vst [vmem:[%s275 + $0x8] sm:$0xff] %v320
      %s323 = smul.u32 2, %s17
      %p324 = scmp.lt.s32.totalorder %s323, 3
      %s325 = scalar_select %p324, %s323, 3
      %s326 = smul.addr %s325, 8
      %s327 = scalar_lea.vmem %s6, %s326
      // Predicated region
      $region45: #{residual_block.5} parent=43 // pred_check
        %p328 = pneg %p171
      $region46: #{residual_block.5} parent=43 // pred_check_branch
        %330 = sbr.rel (%p328) target = $region48
      $region47: #{residual_block.5} parent=43 // pred_region
        %s331 = smul.u32 2, %s17
      $region48: #{residual_block.5} parent=43 // pred_fallthru
        _
    $region44: #{residual_block.5} parent=5 // pred_fallthru
      _
    %p332 = scmp.le.s32.totalorder 2, %s12
    // Predicated region
    $region49: #{residual_block.5} parent=5 // pred_check
      %p333 = pneg %p332
    $region50: #{residual_block.5} parent=5 // pred_check_branch
      %335 = sbr.rel (%p333) target = $region52
    $region51: #{residual_block.5} parent=5 // pred_region
      %s336 = ssub.s32 %s12, 2
      // Predicated region
      $region53: #{residual_block.5} parent=51 // pred_check
        %p337 = pneg %p177
      $region54: #{residual_block.5} parent=51 // pred_check_branch
        %339 = sbr.rel (%p337) target = $region56
      $region55: #{residual_block.5} parent=51 // pred_region
        %s340 = smul.u32 2, %s18
        %p341 = scmp.lt.s32.totalorder %s340, 3
        %s342 = scalar_select %p341, %s340, 3
        %s343 = smul.addr %s342, 8
        %s344 = scalar_lea.vmem %s6, %s343
      $region56: #{residual_block.5} parent=51 // pred_fallthru
        _
    $region52: #{residual_block.5} parent=5 // pred_fallthru
      _
  $region6: #{residual_block.5} parent=0 // loop_footer
    %s16 = sadd.s32 1, %s12
  $region7: #{residual_block.5} parent=0 // loop_footer_branch
    %11 = sbr.rel target = $region3
  $region8: #{residual_block.5} parent=0 // loop_exit
    _

</llo_original>
